<compile_context>
chip_gen: v6e
topology: v6e:2x2x1
jax: 0.10.0
libtpu: 0.0.40
codegen_flags: <defaults>
</compile_context>

<pallas_src>
import numpy as np
import jax
import jax.numpy as jnp
from jax.experimental import pallas as pl
from jax.experimental.pallas import tpu as pltpu

NEG_SLOPE = 0.01                 # nn.LeakyReLU(0.01)
W_IN = 32                        # flattened input length per sample (module requires 32)
W_S = 16                         # per-sample width after the stride-2 convs
SAMPLES_PER_STEP = 8             # 8 samples * 16 lanes = 128 lane-dense activations
LANE_W = SAMPLES_PER_STEP * W_S  # 128


# --------------------------- parameter generation ---------------------------

def _fold_bn(w2d, gamma, beta, mean, var, eps=1e-3):
    # eval-mode BatchNorm2d(eps=0.001) folded into the preceding bias-free conv
    scale = gamma / np.sqrt(var + eps)
    return w2d * scale[:, None], (beta - mean * scale)[:, None]


def init_params(key):
    ks = iter(jax.random.split(key, 40))

    def nrm(shape, s=0.5):
        return np.asarray(s * jax.random.normal(next(ks), shape, jnp.float32))

    def bn(c):
        gamma = np.asarray(jax.random.uniform(next(ks), (c,), jnp.float32, 0.5, 1.5))
        beta = nrm((c,), 0.1)
        mean = nrm((c,), 0.1)
        var = np.asarray(jax.random.uniform(next(ks), (c,), jnp.float32, 0.5, 1.5))
        return gamma, beta, mean, var

    p = {}
    # TODO(synk): DepthwiseSeparableConv assumed as depthwise 3x3/s2/p1 + pointwise 1x1.
    dw_full = nrm((1, 1, 3, 3))
    p["dw"] = dw_full[0, 0, 1, :]                      # H=1: only the middle kernel row is live
    p["pw"] = nrm((4, 1, 1, 1)).reshape(4, 1)

    cv2_w = nrm((4, 1, 1, 1)).reshape(4, 1)
    p["cv2_w"], p["cv2_b"] = _fold_bn(cv2_w, *bn(4))

    p["ca1"] = nrm((4, 4, 1, 1)).reshape(4, 4)         # ChannelAttention.fc1 (no bias)
    p["ca2"] = nrm((4, 4, 1, 1)).reshape(4, 4)         # ChannelAttention.fc2 (no bias)

    cv5_w = nrm((4, 16, 1, 1)).reshape(4, 16)
    p["cv5_w"], p["cv5_b"] = _fold_bn(cv5_w, *bn(4))

    cv6_w = nrm((4, 4, 3, 1))
    p["cv6_w"], p["cv6_b"] = _fold_bn(cv6_w[:, :, 1, 0], *bn(4))   # only middle H-tap sees data

    cv7_w = nrm((4, 4, 1, 3))
    g, b_, m_, v_ = bn(4)
    scale = g / np.sqrt(v_ + 1e-3)
    p["cv7_w0"] = cv7_w[:, :, 0, 0] * scale[:, None]
    p["cv7_w1"] = cv7_w[:, :, 0, 1] * scale[:, None]
    p["cv7_w2"] = cv7_w[:, :, 0, 2] * scale[:, None]
    p["cv7_b"] = (b_ - m_ * scale)[:, None]

    cv8_w = nrm((1, 8, 1, 1)).reshape(1, 8)
    p["cv8_w"], p["cv8_b"] = _fold_bn(cv8_w, *bn(1))

    p["fc_w"] = nrm((4, 16))                           # nn.Linear(16, 4): (out, in)
    p["fc_b"] = nrm((4,)).reshape(4, 1)
    return p


# ------------------------------- slab packing -------------------------------

def build_slab(p):
    """Pack every constant into one lane-dense (rows, 128) f32 slab.

    Per-channel vectors are kept as (4,1) (broadcast in-kernel); blocks are
    packed side-by-side along lanes (8-lane aligned) inside 8-row groups.
    """
    blocks = []

    def add(name, arr):
        a = np.asarray(arr, np.float32)
        if a.ndim == 1:
            a = a.reshape(1, -1)
        blocks.append((name, a))

    dw, pw = p["dw"], p["pw"]
    # cv1: fold the 3 depthwise taps into the pointwise 1->4 weights
    add("pwk0", pw * dw[0])            # (4,1)  tap for x[2w-1] (odd[w-1])
    add("pwk1", pw * dw[1])            # (4,1)  tap for x[2w]   (even[w])
    add("pwk2", pw * dw[2])            # (4,1)  tap for x[2w+1] (odd[w])
    add("cv2_w", p["cv2_w"])
    add("cv2_b", p["cv2_b"])
    add("ca1", p["ca1"])
    add("ca2", p["ca2"])
    for k in range(4):
        add(f"cv5_w{k}", p["cv5_w"][:, 4 * k:4 * k + 4])
    add("cv5_b", p["cv5_b"])
    add("cv6_w", p["cv6_w"])
    add("cv6_b", p["cv6_b"])
    add("cv7_w0", p["cv7_w0"])
    add("cv7_w1", p["cv7_w1"])
    add("cv7_w2", p["cv7_w2"])
    add("cv7_b", p["cv7_b"])
    add("cv8_wy", p["cv8_w"][:, 0:4])
    add("cv8_wx", p["cv8_w"][:, 4:8])
    add("cv8_b", p["cv8_b"])
    add("fc_b", p["fc_b"])
    # fc weight tiled across the 8 per-step samples -> (4, 128), lane-dense
    add("fc_wt", np.tile(p["fc_w"], (1, SAMPLES_PER_STEP)))

    LANES, ALIGN = 128, 8
    layout = {}
    row_grp, col, rows = 0, 0, 8
    for name, a in blocks:
        h, w = a.shape
        wa = ((w + ALIGN - 1) // ALIGN) * ALIGN
        if col + wa > LANES:
            row_grp += 8
            col = 0
        layout[name] = (row_grp, col, h, w)
        col += wa
        rows = row_grp + 8
    slab = np.zeros((rows, LANES), np.float32)
    for name, a in blocks:
        r0, c0, h, w = layout[name]
        slab[r0:r0 + h, c0:c0 + w] = a
    return jnp.asarray(slab), layout


# ------------------------------- the kernel ---------------------------------

def _make_kernel(L, layout):
    def kernel(xin_ref, slab_ref, out_ref):
        def blk(name):
            r0, c0, h, w = layout[name]
            return slab_ref[r0:r0 + h, c0:c0 + w]        # static (sub-tile) VMEM slice

        def dot(a, b):
            return jnp.dot(a, b, preferred_element_type=jnp.float32)

        def leaky(v):
            return jnp.where(v > 0, v, NEG_SLOPE * v)

        # lane value from (l - d) / (l + d); circular -- callers mask sample edges
        def from_below(v, d):
            return pltpu.roll(v, d, axis=1)

        def from_above(v, d):
            return pltpu.roll(v, (L - d) % L, axis=1)

        # within-sample width index (each sample owns 16 consecutive lanes)
        w1 = jax.lax.broadcasted_iota(jnp.int32, (1, L), 1) & 15    # (1, L)
        w4 = jnp.broadcast_to(w1, (4, L))                           # (4, L)

        x_even = xin_ref[0:1, :]       # u[2w]            (natural per-sample order)
        x_odd = xin_ref[1:2, :]        # u[2w+1]
        x_even_p = xin_ref[2:3, :]     # u[2w] with each sample's 16 lanes 4x4-transposed

        # ---- cv1: depthwise 3x3/stride-2 (H=1) + pointwise 1->4, taps folded into pw ----
        odd_prev = jnp.where(w1 >= 1, from_below(x_odd, 1), 0.0)    # u[2w-1], zero at w=0
        x1 = blk("pwk0") * odd_prev + blk("pwk1") * x_even + blk("pwk2") * x_odd   # (4, L)

        # ---- cv2 (1x1, stride 2) + folded BN + LeakyReLU, on the permuted lanes ----
        x2p = leaky(blk("cv2_w") * x_even_p + blk("cv2_b"))          # (4, L) permuted per-sample

        # ---- helper: XOR-butterfly reduction within each 16-lane sample group ----
        def xor_reduce(v, deltas, op):
            r = v
            for d in deltas:
                partner = jnp.where((w4 & d) == 0, from_above(r, d), from_below(r, d))
                r = op(r, partner)
            return r

        # ---- ChannelAttention: adaptive avg/max pool(4) + fc1/relu/fc2 (no sigmoid) ----
        # Under the 4x4 lane transpose the contiguous bins become mod-4 residue classes,
        # so this butterfly leaves the result already in the .view(1,4,1,16) layout.
        e_max = xor_reduce(x2p, (4, 8), jnp.maximum)                 # (4, L)
        e_avg = xor_reduce(x2p, (4, 8), jnp.add) * 0.25              # (4, L)
        ca1 = blk("ca1")
        hca = jnp.maximum(dot(ca1, e_avg), 0.0) + jnp.maximum(dot(ca1, e_max), 0.0)
        x2a = dot(blk("ca2"), hca)                                   # (4, L)

        # ---- SPP max-pool chain (k=5, s=1, p=2) via rolls + edge masks ----
        def pool5(v):
            def tap(d):  # candidate v[l+d] if inside the sample, else v[l] (neutral for max)
                if d > 0:
                    c, ok = from_above(v, d), w4 <= 15 - d
                else:
                    c, ok = from_below(v, -d), w4 >= -d
                return jnp.where(ok, c, v)
            return jnp.maximum(v, jnp.maximum(jnp.maximum(tap(1), tap(-1)),
                                              jnp.maximum(tap(2), tap(-2))))

        mp1 = pool5(x1)
        mp2 = pool5(mp1)
        mp3 = pool5(mp2)

        # ---- cv5: 1x1 conv on cat([x1, mp1, mp2, mp3], ch) as partial-sum dots ----
        # (kept as partial sums: MRB-friendly on v7x; on v5e one could stack the four
        #  operands in a VMEM scratch and do a single (4,16)@(16,L) dot instead)
        y5 = leaky(dot(blk("cv5_w0"), x1) + dot(blk("cv5_w1"), mp1)
                   + dot(blk("cv5_w2"), mp2) + dot(blk("cv5_w3"), mp3) + blk("cv5_b"))

        # ---- cv6: (3,1) kernel, H=1 -> pure channel mix ----
        y6 = leaky(dot(blk("cv6_w"), y5) + blk("cv6_b"))

        # ---- cv7: (1,3) kernel -> 3 width taps, zero padded at sample edges ----
        y6m = jnp.where(w4 >= 1, from_below(y6, 1), 0.0)
        y6p = jnp.where(w4 <= 14, from_above(y6, 1), 0.0)
        y7 = leaky(dot(blk("cv7_w0"), y6m) + dot(blk("cv7_w1"), y6)
                   + dot(blk("cv7_w2"), y6p) + blk("cv7_b"))

        # ---- cv8: 1x1 conv on cat([y7, x2a], ch) ----
        o = leaky(dot(blk("cv8_wy"), y7) + dot(blk("cv8_wx"), x2a) + blk("cv8_b"))  # (1, L)

        # ---- fc: per-sample Linear(16,4) = tiled weights * o + butterfly lane sum ----
        fcp = blk("fc_wt") * o                                       # (4, L)
        s = xor_reduce(fcp, (1, 2, 4, 8), jnp.add)                   # every lane = sample sum
        out_ref[...] = s + blk("fc_b")                               # lane-dense (4, L) store

    return kernel


# -------------------------------- wrapper -----------------------------------

def sppcspc_forward(x, slab, layout):
    """x: (B, 32) -- B independent samples of the (single-sample) module."""
    xf = jnp.asarray(x, jnp.float32).reshape(-1, W_IN)
    B = xf.shape[0]
    assert B % SAMPLES_PER_STEP == 0, "demo wrapper expects batch to be a multiple of 8"
    G = B // SAMPLES_PER_STEP

    # Input layout plumbing (tiny XLA ops, outside the kernel):
    #   row 0: even taps u[2w]        row 1: odd taps u[2w+1]
    #   row 2: even taps with each sample's 16 lanes 4x4-transposed (for the CA branch)
    pairs = xf.reshape(B, W_S, 2)
    x_even, x_odd = pairs[..., 0], pairs[..., 1]
    x_even_p = x_even.reshape(B, 4, 4).transpose(0, 2, 1).reshape(B, W_S)
    xin = jnp.stack([x_even.reshape(-1), x_odd.reshape(-1), x_even_p.reshape(-1)], axis=0)

    kernel = _make_kernel(LANE_W, layout)
    flops_per_step = 11 * 2 * 4 * 4 * LANE_W + 2 * 2 * 4 * LANE_W + 60 * 4 * LANE_W
    cost = pl.CostEstimate(
        flops=int(G * flops_per_step), transcendentals=0,
        bytes_accessed=int(xin.size + slab.size + 4 * B * W_S) * 4)

    out_wide = pl.pallas_call(
        kernel,
        grid=(G,),
        in_specs=[pl.BlockSpec((3, LANE_W), lambda g: (0, g)),
                  pl.BlockSpec(slab.shape, lambda g: (0, 0))],   # resident constants
        out_specs=pl.BlockSpec((4, LANE_W), lambda g: (0, g)),
        out_shape=jax.ShapeDtypeStruct((4, B * W_S), jnp.float32),
        compiler_params=pltpu.CompilerParams(dimension_semantics=("parallel",)),
        cost_estimate=cost,
    )(xin, slab)

    # every lane within a sample's 16-lane group holds that sample's fc output
    out = out_wide[:, ::W_S].T                                   # (B, 4)
    return out.reshape(B, 1, 1, 4)                               # module emits (1,1,4) / sample


if __name__ == "__main__":
    key = jax.random.PRNGKey(0)
    kx, kp = jax.random.split(key)
    x = jax.random.normal(kx, (16, W_IN), jnp.float32)   # 16 samples; module sees each as (1,1,1,32)

    params = init_params(kp)
    slab, layout = build_slab(params)

    fwd = jax.jit(lambda xx: sppcspc_forward(xx, slab, layout))
    out = jax.block_until_ready(fwd(x))
    assert out.shape == (16, 1, 1, 4)
    assert bool(jnp.all(jnp.isfinite(out)))
    print("KERNEL_OK")
</pallas_src>

<mosaic_0001>
module attributes {stable_mosaic.version = 11 : i64} {
  func.func @kernel(%arg0: i32, %arg1: memref<3x128xf32, #tpu.memory_space<vmem>>, %arg2: memref<24x128xf32, #tpu.memory_space<vmem>>, %arg3: memref<4x128xf32, #tpu.memory_space<vmem>>) attributes {dimension_semantics = [#tpu.dimension_semantics<parallel>], iteration_bounds = array<i64: 2>, scalar_prefetch = 0 : i64, scratch_operands = 0 : i64, tpu.core_type = #tpu.core_type<tc>, window_params = [{transform_indices = @transform_0, window_bounds = array<i64: 3, 128>}, {pipeline_mode = #tpu.pipeline_mode<synchronous>, transform_indices = @transform_1, window_bounds = array<i64: 24, 128>}, {transform_indices = @transform_2, window_bounds = array<i64: 4, 128>}]} {
    %0 = tpu.iota {dimensions = array<i32: 1>} : vector<1x128xi32>
    %c15_i32 = arith.constant 15 : i32
    %1 = vector.broadcast %c15_i32 : i32 to vector<1x128xi32>
    %2 = arith.andi %0, %1 : vector<1x128xi32>
    %3 = vector.shape_cast %2 : vector<1x128xi32> to vector<1x128xi32>
    %4 = vector.broadcast %3 : vector<1x128xi32> to vector<4x128xi32>
    %c0 = arith.constant 0 : index
    %c0_0 = arith.constant 0 : index
    %5 = vector.load %arg1[%c0, %c0_0] : memref<3x128xf32, #tpu.memory_space<vmem>>, vector<1x128xf32>
    %c1 = arith.constant 1 : index
    %c0_1 = arith.constant 0 : index
    %6 = vector.load %arg1[%c1, %c0_1] : memref<3x128xf32, #tpu.memory_space<vmem>>, vector<1x128xf32>
    %c2 = arith.constant 2 : index
    %c0_2 = arith.constant 0 : index
    %7 = vector.load %arg1[%c2, %c0_2] : memref<3x128xf32, #tpu.memory_space<vmem>>, vector<1x128xf32>
    %c1_i32 = arith.constant 1 : i32
    %8 = vector.broadcast %c1_i32 : i32 to vector<1x128xi32>
    %9 = arith.cmpi sge, %2, %8 : vector<1x128xi32>
    %c1_i32_3 = arith.constant 1 : i32
    %10 = tpu.dynamic_rotate %6 by %c1_i32_3 dim 1 : vector<1x128xf32>, i32 -> vector<1x128xf32>
    %cst = arith.constant 0.000000e+00 : f32
    %11 = vector.broadcast %cst : f32 to vector<1x128xf32>
    %12 = arith.select %9, %10, %11 : vector<1x128xi1>, vector<1x128xf32>
    %c0_4 = arith.constant 0 : index
    %c0_5 = arith.constant 0 : index
    %13 = vector.load %arg2[%c0_4, %c0_5] : memref<24x128xf32, #tpu.memory_space<vmem>>, vector<4x1xf32>
    %14 = vector.broadcast %13 : vector<4x1xf32> to vector<4x128xf32>
    %15 = vector.broadcast %12 : vector<1x128xf32> to vector<4x128xf32>
    %16 = arith.mulf %14, %15 : vector<4x128xf32>
    %c0_6 = arith.constant 0 : index
    %c8 = arith.constant 8 : index
    %17 = vector.load %arg2[%c0_6, %c8] : memref<24x128xf32, #tpu.memory_space<vmem>>, vector<4x1xf32>
    %18 = vector.broadcast %17 : vector<4x1xf32> to vector<4x128xf32>
    %19 = vector.broadcast %5 : vector<1x128xf32> to vector<4x128xf32>
    %20 = arith.mulf %18, %19 : vector<4x128xf32>
    %21 = arith.addf %16, %20 : vector<4x128xf32>
    %c0_7 = arith.constant 0 : index
    %c16 = arith.constant 16 : index
    %22 = vector.load %arg2[%c0_7, %c16] : memref<24x128xf32, #tpu.memory_space<vmem>>, vector<4x1xf32>
    %23 = vector.broadcast %22 : vector<4x1xf32> to vector<4x128xf32>
    %24 = vector.broadcast %6 : vector<1x128xf32> to vector<4x128xf32>
    %25 = arith.mulf %23, %24 : vector<4x128xf32>
    %26 = arith.addf %21, %25 : vector<4x128xf32>
    %c0_8 = arith.constant 0 : index
    %c24 = arith.constant 24 : index
    %27 = vector.load %arg2[%c0_8, %c24] : memref<24x128xf32, #tpu.memory_space<vmem>>, vector<4x1xf32>
    %28 = vector.broadcast %27 : vector<4x1xf32> to vector<4x128xf32>
    %29 = vector.broadcast %7 : vector<1x128xf32> to vector<4x128xf32>
    %30 = arith.mulf %28, %29 : vector<4x128xf32>
    %c0_9 = arith.constant 0 : index
    %c32 = arith.constant 32 : index
    %31 = vector.load %arg2[%c0_9, %c32] : memref<24x128xf32, #tpu.memory_space<vmem>>, vector<4x1xf32>
    %32 = vector.broadcast %31 : vector<4x1xf32> to vector<4x128xf32>
    %33 = arith.addf %30, %32 : vector<4x128xf32>
    %cst_10 = arith.constant 0.000000e+00 : f32
    %34 = vector.broadcast %cst_10 : f32 to vector<4x128xf32>
    %35 = arith.cmpf ogt, %33, %34 : vector<4x128xf32>
    %cst_11 = arith.constant 0.00999999977 : f32
    %36 = vector.broadcast %cst_11 : f32 to vector<4x128xf32>
    %37 = arith.mulf %36, %33 : vector<4x128xf32>
    %38 = arith.select %35, %33, %37 : vector<4x128xi1>, vector<4x128xf32>
    %c4_i32 = arith.constant 4 : i32
    %39 = vector.broadcast %c4_i32 : i32 to vector<4x128xi32>
    %40 = arith.andi %4, %39 : vector<4x128xi32>
    %c0_i32 = arith.constant 0 : i32
    %41 = vector.broadcast %c0_i32 : i32 to vector<4x128xi32>
    %42 = arith.cmpi eq, %40, %41 : vector<4x128xi32>
    %c124_i32 = arith.constant 124 : i32
    %43 = tpu.dynamic_rotate %38 by %c124_i32 dim 1 : vector<4x128xf32>, i32 -> vector<4x128xf32>
    %c4_i32_12 = arith.constant 4 : i32
    %44 = tpu.dynamic_rotate %38 by %c4_i32_12 dim 1 : vector<4x128xf32>, i32 -> vector<4x128xf32>
    %45 = arith.select %42, %43, %44 : vector<4x128xi1>, vector<4x128xf32>
    %46 = arith.maximumf %38, %45 : vector<4x128xf32>
    %c8_i32 = arith.constant 8 : i32
    %47 = vector.broadcast %c8_i32 : i32 to vector<4x128xi32>
    %48 = arith.andi %4, %47 : vector<4x128xi32>
    %c0_i32_13 = arith.constant 0 : i32
    %49 = vector.broadcast %c0_i32_13 : i32 to vector<4x128xi32>
    %50 = arith.cmpi eq, %48, %49 : vector<4x128xi32>
    %c120_i32 = arith.constant 120 : i32
    %51 = tpu.dynamic_rotate %46 by %c120_i32 dim 1 : vector<4x128xf32>, i32 -> vector<4x128xf32>
    %c8_i32_14 = arith.constant 8 : i32
    %52 = tpu.dynamic_rotate %46 by %c8_i32_14 dim 1 : vector<4x128xf32>, i32 -> vector<4x128xf32>
    %53 = arith.select %50, %51, %52 : vector<4x128xi1>, vector<4x128xf32>
    %54 = arith.maximumf %46, %53 : vector<4x128xf32>
    %c4_i32_15 = arith.constant 4 : i32
    %55 = vector.broadcast %c4_i32_15 : i32 to vector<4x128xi32>
    %56 = arith.andi %4, %55 : vector<4x128xi32>
    %c0_i32_16 = arith.constant 0 : i32
    %57 = vector.broadcast %c0_i32_16 : i32 to vector<4x128xi32>
    %58 = arith.cmpi eq, %56, %57 : vector<4x128xi32>
    %c124_i32_17 = arith.constant 124 : i32
    %59 = tpu.dynamic_rotate %38 by %c124_i32_17 dim 1 : vector<4x128xf32>, i32 -> vector<4x128xf32>
    %c4_i32_18 = arith.constant 4 : i32
    %60 = tpu.dynamic_rotate %38 by %c4_i32_18 dim 1 : vector<4x128xf32>, i32 -> vector<4x128xf32>
    %61 = arith.select %58, %59, %60 : vector<4x128xi1>, vector<4x128xf32>
    %62 = arith.addf %38, %61 : vector<4x128xf32>
    %c8_i32_19 = arith.constant 8 : i32
    %63 = vector.broadcast %c8_i32_19 : i32 to vector<4x128xi32>
    %64 = arith.andi %4, %63 : vector<4x128xi32>
    %c0_i32_20 = arith.constant 0 : i32
    %65 = vector.broadcast %c0_i32_20 : i32 to vector<4x128xi32>
    %66 = arith.cmpi eq, %64, %65 : vector<4x128xi32>
    %c120_i32_21 = arith.constant 120 : i32
    %67 = tpu.dynamic_rotate %62 by %c120_i32_21 dim 1 : vector<4x128xf32>, i32 -> vector<4x128xf32>
    %c8_i32_22 = arith.constant 8 : i32
    %68 = tpu.dynamic_rotate %62 by %c8_i32_22 dim 1 : vector<4x128xf32>, i32 -> vector<4x128xf32>
    %69 = arith.select %66, %67, %68 : vector<4x128xi1>, vector<4x128xf32>
    %70 = arith.addf %62, %69 : vector<4x128xf32>
    %cst_23 = arith.constant 2.500000e-01 : f32
    %71 = vector.broadcast %cst_23 : f32 to vector<4x128xf32>
    %72 = arith.mulf %70, %71 : vector<4x128xf32>
    %c0_24 = arith.constant 0 : index
    %c40 = arith.constant 40 : index
    %73 = vector.load %arg2[%c0_24, %c40] : memref<24x128xf32, #tpu.memory_space<vmem>>, vector<4x4xf32>
    %cst_25 = arith.constant dense<0.000000e+00> : vector<4x128xf32>
    %74 = tpu.matmul %73, %72, %cst_25 {dimension_numbers = #tpu.dot_dimension_numbers<[1], [0], [0], [1], [0, 0, 1, 1], [], []>} : vector<4x4xf32>, vector<4x128xf32>, vector<4x128xf32> -> vector<4x128xf32>
    %cst_26 = arith.constant 0.000000e+00 : f32
    %75 = vector.broadcast %cst_26 : f32 to vector<4x128xf32>
    %76 = arith.maximumf %74, %75 : vector<4x128xf32>
    %cst_27 = arith.constant dense<0.000000e+00> : vector<4x128xf32>
    %77 = tpu.matmul %73, %54, %cst_27 {dimension_numbers = #tpu.dot_dimension_numbers<[1], [0], [0], [1], [0, 0, 1, 1], [], []>} : vector<4x4xf32>, vector<4x128xf32>, vector<4x128xf32> -> vector<4x128xf32>
    %cst_28 = arith.constant 0.000000e+00 : f32
    %78 = vector.broadcast %cst_28 : f32 to vector<4x128xf32>
    %79 = arith.maximumf %77, %78 : vector<4x128xf32>
    %80 = arith.addf %76, %79 : vector<4x128xf32>
    %c0_29 = arith.constant 0 : index
    %c48 = arith.constant 48 : index
    %81 = vector.load %arg2[%c0_29, %c48] : memref<24x128xf32, #tpu.memory_space<vmem>>, vector<4x4xf32>
    %cst_30 = arith.constant dense<0.000000e+00> : vector<4x128xf32>
    %82 = tpu.matmul %81, %80, %cst_30 {dimension_numbers = #tpu.dot_dimension_numbers<[1], [0], [0], [1], [0, 0, 1, 1], [], []>} : vector<4x4xf32>, vector<4x128xf32>, vector<4x128xf32> -> vector<4x128xf32>
    %c127_i32 = arith.constant 127 : i32
    %83 = tpu.dynamic_rotate %26 by %c127_i32 dim 1 : vector<4x128xf32>, i32 -> vector<4x128xf32>
    %c14_i32 = arith.constant 14 : i32
    %84 = vector.broadcast %c14_i32 : i32 to vector<4x128xi32>
    %85 = arith.cmpi sle, %4, %84 : vector<4x128xi32>
    %86 = arith.select %85, %83, %26 : vector<4x128xi1>, vector<4x128xf32>
    %c1_i32_31 = arith.constant 1 : i32
    %87 = tpu.dynamic_rotate %26 by %c1_i32_31 dim 1 : vector<4x128xf32>, i32 -> vector<4x128xf32>
    %c1_i32_32 = arith.constant 1 : i32
    %88 = vector.broadcast %c1_i32_32 : i32 to vector<4x128xi32>
    %89 = arith.cmpi sge, %4, %88 : vector<4x128xi32>
    %90 = arith.select %89, %87, %26 : vector<4x128xi1>, vector<4x128xf32>
    %91 = arith.maximumf %86, %90 : vector<4x128xf32>
    %c126_i32 = arith.constant 126 : i32
    %92 = tpu.dynamic_rotate %26 by %c126_i32 dim 1 : vector<4x128xf32>, i32 -> vector<4x128xf32>
    %c13_i32 = arith.constant 13 : i32
    %93 = vector.broadcast %c13_i32 : i32 to vector<4x128xi32>
    %94 = arith.cmpi sle, %4, %93 : vector<4x128xi32>
    %95 = arith.select %94, %92, %26 : vector<4x128xi1>, vector<4x128xf32>
    %c2_i32 = arith.constant 2 : i32
    %96 = tpu.dynamic_rotate %26 by %c2_i32 dim 1 : vector<4x128xf32>, i32 -> vector<4x128xf32>
    %c2_i32_33 = arith.constant 2 : i32
    %97 = vector.broadcast %c2_i32_33 : i32 to vector<4x128xi32>
    %98 = arith.cmpi sge, %4, %97 : vector<4x128xi32>
    %99 = arith.select %98, %96, %26 : vector<4x128xi1>, vector<4x128xf32>
    %100 = arith.maximumf %95, %99 : vector<4x128xf32>
    %101 = arith.maximumf %91, %100 : vector<4x128xf32>
    %102 = arith.maximumf %26, %101 : vector<4x128xf32>
    %c127_i32_34 = arith.constant 127 : i32
    %103 = tpu.dynamic_rotate %102 by %c127_i32_34 dim 1 : vector<4x128xf32>, i32 -> vector<4x128xf32>
    %c14_i32_35 = arith.constant 14 : i32
    %104 = vector.broadcast %c14_i32_35 : i32 to vector<4x128xi32>
    %105 = arith.cmpi sle, %4, %104 : vector<4x128xi32>
    %106 = arith.select %105, %103, %102 : vector<4x128xi1>, vector<4x128xf32>
    %c1_i32_36 = arith.constant 1 : i32
    %107 = tpu.dynamic_rotate %102 by %c1_i32_36 dim 1 : vector<4x128xf32>, i32 -> vector<4x128xf32>
    %c1_i32_37 = arith.constant 1 : i32
    %108 = vector.broadcast %c1_i32_37 : i32 to vector<4x128xi32>
    %109 = arith.cmpi sge, %4, %108 : vector<4x128xi32>
    %110 = arith.select %109, %107, %102 : vector<4x128xi1>, vector<4x128xf32>
    %111 = arith.maximumf %106, %110 : vector<4x128xf32>
    %c126_i32_38 = arith.constant 126 : i32
    %112 = tpu.dynamic_rotate %102 by %c126_i32_38 dim 1 : vector<4x128xf32>, i32 -> vector<4x128xf32>
    %c13_i32_39 = arith.constant 13 : i32
    %113 = vector.broadcast %c13_i32_39 : i32 to vector<4x128xi32>
    %114 = arith.cmpi sle, %4, %113 : vector<4x128xi32>
    %115 = arith.select %114, %112, %102 : vector<4x128xi1>, vector<4x128xf32>
    %c2_i32_40 = arith.constant 2 : i32
    %116 = tpu.dynamic_rotate %102 by %c2_i32_40 dim 1 : vector<4x128xf32>, i32 -> vector<4x128xf32>
    %c2_i32_41 = arith.constant 2 : i32
    %117 = vector.broadcast %c2_i32_41 : i32 to vector<4x128xi32>
    %118 = arith.cmpi sge, %4, %117 : vector<4x128xi32>
    %119 = arith.select %118, %116, %102 : vector<4x128xi1>, vector<4x128xf32>
    %120 = arith.maximumf %115, %119 : vector<4x128xf32>
    %121 = arith.maximumf %111, %120 : vector<4x128xf32>
    %122 = arith.maximumf %102, %121 : vector<4x128xf32>
    %c127_i32_42 = arith.constant 127 : i32
    %123 = tpu.dynamic_rotate %122 by %c127_i32_42 dim 1 : vector<4x128xf32>, i32 -> vector<4x128xf32>
    %c14_i32_43 = arith.constant 14 : i32
    %124 = vector.broadcast %c14_i32_43 : i32 to vector<4x128xi32>
    %125 = arith.cmpi sle, %4, %124 : vector<4x128xi32>
    %126 = arith.select %125, %123, %122 : vector<4x128xi1>, vector<4x128xf32>
    %c1_i32_44 = arith.constant 1 : i32
    %127 = tpu.dynamic_rotate %122 by %c1_i32_44 dim 1 : vector<4x128xf32>, i32 -> vector<4x128xf32>
    %c1_i32_45 = arith.constant 1 : i32
    %128 = vector.broadcast %c1_i32_45 : i32 to vector<4x128xi32>
    %129 = arith.cmpi sge, %4, %128 : vector<4x128xi32>
    %130 = arith.select %129, %127, %122 : vector<4x128xi1>, vector<4x128xf32>
    %131 = arith.maximumf %126, %130 : vector<4x128xf32>
    %c126_i32_46 = arith.constant 126 : i32
    %132 = tpu.dynamic_rotate %122 by %c126_i32_46 dim 1 : vector<4x128xf32>, i32 -> vector<4x128xf32>
    %c13_i32_47 = arith.constant 13 : i32
    %133 = vector.broadcast %c13_i32_47 : i32 to vector<4x128xi32>
    %134 = arith.cmpi sle, %4, %133 : vector<4x128xi32>
    %135 = arith.select %134, %132, %122 : vector<4x128xi1>, vector<4x128xf32>
    %c2_i32_48 = arith.constant 2 : i32
    %136 = tpu.dynamic_rotate %122 by %c2_i32_48 dim 1 : vector<4x128xf32>, i32 -> vector<4x128xf32>
    %c2_i32_49 = arith.constant 2 : i32
    %137 = vector.broadcast %c2_i32_49 : i32 to vector<4x128xi32>
    %138 = arith.cmpi sge, %4, %137 : vector<4x128xi32>
    %139 = arith.select %138, %136, %122 : vector<4x128xi1>, vector<4x128xf32>
    %140 = arith.maximumf %135, %139 : vector<4x128xf32>
    %141 = arith.maximumf %131, %140 : vector<4x128xf32>
    %142 = arith.maximumf %122, %141 : vector<4x128xf32>
    %c0_50 = arith.constant 0 : index
    %c56 = arith.constant 56 : index
    %143 = vector.load %arg2[%c0_50, %c56] : memref<24x128xf32, #tpu.memory_space<vmem>>, vector<4x4xf32>
    %cst_51 = arith.constant dense<0.000000e+00> : vector<4x128xf32>
    %144 = tpu.matmul %143, %26, %cst_51 {dimension_numbers = #tpu.dot_dimension_numbers<[1], [0], [0], [1], [0, 0, 1, 1], [], []>} : vector<4x4xf32>, vector<4x128xf32>, vector<4x128xf32> -> vector<4x128xf32>
    %c0_52 = arith.constant 0 : index
    %c64 = arith.constant 64 : index
    %145 = vector.load %arg2[%c0_52, %c64] : memref<24x128xf32, #tpu.memory_space<vmem>>, vector<4x4xf32>
    %cst_53 = arith.constant dense<0.000000e+00> : vector<4x128xf32>
    %146 = tpu.matmul %145, %102, %cst_53 {dimension_numbers = #tpu.dot_dimension_numbers<[1], [0], [0], [1], [0, 0, 1, 1], [], []>} : vector<4x4xf32>, vector<4x128xf32>, vector<4x128xf32> -> vector<4x128xf32>
    %147 = arith.addf %144, %146 : vector<4x128xf32>
    %c0_54 = arith.constant 0 : index
    %c72 = arith.constant 72 : index
    %148 = vector.load %arg2[%c0_54, %c72] : memref<24x128xf32, #tpu.memory_space<vmem>>, vector<4x4xf32>
    %cst_55 = arith.constant dense<0.000000e+00> : vector<4x128xf32>
    %149 = tpu.matmul %148, %122, %cst_55 {dimension_numbers = #tpu.dot_dimension_numbers<[1], [0], [0], [1], [0, 0, 1, 1], [], []>} : vector<4x4xf32>, vector<4x128xf32>, vector<4x128xf32> -> vector<4x128xf32>
    %150 = arith.addf %147, %149 : vector<4x128xf32>
    %c0_56 = arith.constant 0 : index
    %c80 = arith.constant 80 : index
    %151 = vector.load %arg2[%c0_56, %c80] : memref<24x128xf32, #tpu.memory_space<vmem>>, vector<4x4xf32>
    %cst_57 = arith.constant dense<0.000000e+00> : vector<4x128xf32>
    %152 = tpu.matmul %151, %142, %cst_57 {dimension_numbers = #tpu.dot_dimension_numbers<[1], [0], [0], [1], [0, 0, 1, 1], [], []>} : vector<4x4xf32>, vector<4x128xf32>, vector<4x128xf32> -> vector<4x128xf32>
    %153 = arith.addf %150, %152 : vector<4x128xf32>
    %c0_58 = arith.constant 0 : index
    %c88 = arith.constant 88 : index
    %154 = vector.load %arg2[%c0_58, %c88] : memref<24x128xf32, #tpu.memory_space<vmem>>, vector<4x1xf32>
    %155 = vector.broadcast %154 : vector<4x1xf32> to vector<4x128xf32>
    %156 = arith.addf %153, %155 : vector<4x128xf32>
    %cst_59 = arith.constant 0.000000e+00 : f32
    %157 = vector.broadcast %cst_59 : f32 to vector<4x128xf32>
    %158 = arith.cmpf ogt, %156, %157 : vector<4x128xf32>
    %cst_60 = arith.constant 0.00999999977 : f32
    %159 = vector.broadcast %cst_60 : f32 to vector<4x128xf32>
    %160 = arith.mulf %159, %156 : vector<4x128xf32>
    %161 = arith.select %158, %156, %160 : vector<4x128xi1>, vector<4x128xf32>
    %c0_61 = arith.constant 0 : index
    %c96 = arith.constant 96 : index
    %162 = vector.load %arg2[%c0_61, %c96] : memref<24x128xf32, #tpu.memory_space<vmem>>, vector<4x4xf32>
    %cst_62 = arith.constant dense<0.000000e+00> : vector<4x128xf32>
    %163 = tpu.matmul %162, %161, %cst_62 {dimension_numbers = #tpu.dot_dimension_numbers<[1], [0], [0], [1], [0, 0, 1, 1], [], []>} : vector<4x4xf32>, vector<4x128xf32>, vector<4x128xf32> -> vector<4x128xf32>
    %c0_63 = arith.constant 0 : index
    %c104 = arith.constant 104 : index
    %164 = vector.load %arg2[%c0_63, %c104] : memref<24x128xf32, #tpu.memory_space<vmem>>, vector<4x1xf32>
    %165 = vector.broadcast %164 : vector<4x1xf32> to vector<4x128xf32>
    %166 = arith.addf %163, %165 : vector<4x128xf32>
    %cst_64 = arith.constant 0.000000e+00 : f32
    %167 = vector.broadcast %cst_64 : f32 to vector<4x128xf32>
    %168 = arith.cmpf ogt, %166, %167 : vector<4x128xf32>
    %cst_65 = arith.constant 0.00999999977 : f32
    %169 = vector.broadcast %cst_65 : f32 to vector<4x128xf32>
    %170 = arith.mulf %169, %166 : vector<4x128xf32>
    %171 = arith.select %168, %166, %170 : vector<4x128xi1>, vector<4x128xf32>
    %c1_i32_66 = arith.constant 1 : i32
    %172 = vector.broadcast %c1_i32_66 : i32 to vector<4x128xi32>
    %173 = arith.cmpi sge, %4, %172 : vector<4x128xi32>
    %c1_i32_67 = arith.constant 1 : i32
    %174 = tpu.dynamic_rotate %171 by %c1_i32_67 dim 1 : vector<4x128xf32>, i32 -> vector<4x128xf32>
    %cst_68 = arith.constant 0.000000e+00 : f32
    %175 = vector.broadcast %cst_68 : f32 to vector<4x128xf32>
    %176 = arith.select %173, %174, %175 : vector<4x128xi1>, vector<4x128xf32>
    %c14_i32_69 = arith.constant 14 : i32
    %177 = vector.broadcast %c14_i32_69 : i32 to vector<4x128xi32>
    %178 = arith.cmpi sle, %4, %177 : vector<4x128xi32>
    %c127_i32_70 = arith.constant 127 : i32
    %179 = tpu.dynamic_rotate %171 by %c127_i32_70 dim 1 : vector<4x128xf32>, i32 -> vector<4x128xf32>
    %cst_71 = arith.constant 0.000000e+00 : f32
    %180 = vector.broadcast %cst_71 : f32 to vector<4x128xf32>
    %181 = arith.select %178, %179, %180 : vector<4x128xi1>, vector<4x128xf32>
    %c0_72 = arith.constant 0 : index
    %c112 = arith.constant 112 : index
    %182 = vector.load %arg2[%c0_72, %c112] : memref<24x128xf32, #tpu.memory_space<vmem>>, vector<4x4xf32>
    %cst_73 = arith.constant dense<0.000000e+00> : vector<4x128xf32>
    %183 = tpu.matmul %182, %176, %cst_73 {dimension_numbers = #tpu.dot_dimension_numbers<[1], [0], [0], [1], [0, 0, 1, 1], [], []>} : vector<4x4xf32>, vector<4x128xf32>, vector<4x128xf32> -> vector<4x128xf32>
    %c0_74 = arith.constant 0 : index
    %c120 = arith.constant 120 : index
    %184 = vector.load %arg2[%c0_74, %c120] : memref<24x128xf32, #tpu.memory_space<vmem>>, vector<4x4xf32>
    %cst_75 = arith.constant dense<0.000000e+00> : vector<4x128xf32>
    %185 = tpu.matmul %184, %171, %cst_75 {dimension_numbers = #tpu.dot_dimension_numbers<[1], [0], [0], [1], [0, 0, 1, 1], [], []>} : vector<4x4xf32>, vector<4x128xf32>, vector<4x128xf32> -> vector<4x128xf32>
    %186 = arith.addf %183, %185 : vector<4x128xf32>
    %c8_76 = arith.constant 8 : index
    %c0_77 = arith.constant 0 : index
    %187 = vector.load %arg2[%c8_76, %c0_77] : memref<24x128xf32, #tpu.memory_space<vmem>>, vector<4x4xf32>
    %cst_78 = arith.constant dense<0.000000e+00> : vector<4x128xf32>
    %188 = tpu.matmul %187, %181, %cst_78 {dimension_numbers = #tpu.dot_dimension_numbers<[1], [0], [0], [1], [0, 0, 1, 1], [], []>} : vector<4x4xf32>, vector<4x128xf32>, vector<4x128xf32> -> vector<4x128xf32>
    %189 = arith.addf %186, %188 : vector<4x128xf32>
    %c8_79 = arith.constant 8 : index
    %c8_80 = arith.constant 8 : index
    %190 = vector.load %arg2[%c8_79, %c8_80] : memref<24x128xf32, #tpu.memory_space<vmem>>, vector<4x1xf32>
    %191 = vector.broadcast %190 : vector<4x1xf32> to vector<4x128xf32>
    %192 = arith.addf %189, %191 : vector<4x128xf32>
    %cst_81 = arith.constant 0.000000e+00 : f32
    %193 = vector.broadcast %cst_81 : f32 to vector<4x128xf32>
    %194 = arith.cmpf ogt, %192, %193 : vector<4x128xf32>
    %cst_82 = arith.constant 0.00999999977 : f32
    %195 = vector.broadcast %cst_82 : f32 to vector<4x128xf32>
    %196 = arith.mulf %195, %192 : vector<4x128xf32>
    %197 = arith.select %194, %192, %196 : vector<4x128xi1>, vector<4x128xf32>
    %c8_83 = arith.constant 8 : index
    %c16_84 = arith.constant 16 : index
    %198 = vector.load %arg2[%c8_83, %c16_84] : memref<24x128xf32, #tpu.memory_space<vmem>>, vector<1x4xf32>
    %cst_85 = arith.constant dense<0.000000e+00> : vector<1x128xf32>
    %199 = tpu.matmul %198, %197, %cst_85 {dimension_numbers = #tpu.dot_dimension_numbers<[1], [0], [0], [1], [0, 0, 1, 1], [], []>} : vector<1x4xf32>, vector<4x128xf32>, vector<1x128xf32> -> vector<1x128xf32>
    %c8_86 = arith.constant 8 : index
    %c24_87 = arith.constant 24 : index
    %200 = vector.load %arg2[%c8_86, %c24_87] : memref<24x128xf32, #tpu.memory_space<vmem>>, vector<1x4xf32>
    %cst_88 = arith.constant dense<0.000000e+00> : vector<1x128xf32>
    %201 = tpu.matmul %200, %82, %cst_88 {dimension_numbers = #tpu.dot_dimension_numbers<[1], [0], [0], [1], [0, 0, 1, 1], [], []>} : vector<1x4xf32>, vector<4x128xf32>, vector<1x128xf32> -> vector<1x128xf32>
    %202 = arith.addf %199, %201 : vector<1x128xf32>
    %c8_89 = arith.constant 8 : index
    %c32_90 = arith.constant 32 : index
    %203 = vector.load %arg2[%c8_89, %c32_90] : memref<24x128xf32, #tpu.memory_space<vmem>>, vector<1x1xf32>
    %204 = vector.broadcast %203 : vector<1x1xf32> to vector<1x128xf32>
    %205 = arith.addf %202, %204 : vector<1x128xf32>
    %cst_91 = arith.constant 0.000000e+00 : f32
    %206 = vector.broadcast %cst_91 : f32 to vector<1x128xf32>
    %207 = arith.cmpf ogt, %205, %206 : vector<1x128xf32>
    %cst_92 = arith.constant 0.00999999977 : f32
    %208 = vector.broadcast %cst_92 : f32 to vector<1x128xf32>
    %209 = arith.mulf %208, %205 : vector<1x128xf32>
    %210 = arith.select %207, %205, %209 : vector<1x128xi1>, vector<1x128xf32>
    %c16_93 = arith.constant 16 : index
    %c0_94 = arith.constant 0 : index
    %211 = vector.load %arg2[%c16_93, %c0_94] : memref<24x128xf32, #tpu.memory_space<vmem>>, vector<4x128xf32>
    %212 = vector.broadcast %210 : vector<1x128xf32> to vector<4x128xf32>
    %213 = arith.mulf %211, %212 : vector<4x128xf32>
    %c1_i32_95 = arith.constant 1 : i32
    %214 = vector.broadcast %c1_i32_95 : i32 to vector<4x128xi32>
    %215 = arith.andi %4, %214 : vector<4x128xi32>
    %c0_i32_96 = arith.constant 0 : i32
    %216 = vector.broadcast %c0_i32_96 : i32 to vector<4x128xi32>
    %217 = arith.cmpi eq, %215, %216 : vector<4x128xi32>
    %c127_i32_97 = arith.constant 127 : i32
    %218 = tpu.dynamic_rotate %213 by %c127_i32_97 dim 1 : vector<4x128xf32>, i32 -> vector<4x128xf32>
    %c1_i32_98 = arith.constant 1 : i32
    %219 = tpu.dynamic_rotate %213 by %c1_i32_98 dim 1 : vector<4x128xf32>, i32 -> vector<4x128xf32>
    %220 = arith.select %217, %218, %219 : vector<4x128xi1>, vector<4x128xf32>
    %221 = arith.addf %213, %220 : vector<4x128xf32>
    %c2_i32_99 = arith.constant 2 : i32
    %222 = vector.broadcast %c2_i32_99 : i32 to vector<4x128xi32>
    %223 = arith.andi %4, %222 : vector<4x128xi32>
    %c0_i32_100 = arith.constant 0 : i32
    %224 = vector.broadcast %c0_i32_100 : i32 to vector<4x128xi32>
    %225 = arith.cmpi eq, %223, %224 : vector<4x128xi32>
    %c126_i32_101 = arith.constant 126 : i32
    %226 = tpu.dynamic_rotate %221 by %c126_i32_101 dim 1 : vector<4x128xf32>, i32 -> vector<4x128xf32>
    %c2_i32_102 = arith.constant 2 : i32
    %227 = tpu.dynamic_rotate %221 by %c2_i32_102 dim 1 : vector<4x128xf32>, i32 -> vector<4x128xf32>
    %228 = arith.select %225, %226, %227 : vector<4x128xi1>, vector<4x128xf32>
    %229 = arith.addf %221, %228 : vector<4x128xf32>
    %c4_i32_103 = arith.constant 4 : i32
    %230 = vector.broadcast %c4_i32_103 : i32 to vector<4x128xi32>
    %231 = arith.andi %4, %230 : vector<4x128xi32>
    %c0_i32_104 = arith.constant 0 : i32
    %232 = vector.broadcast %c0_i32_104 : i32 to vector<4x128xi32>
    %233 = arith.cmpi eq, %231, %232 : vector<4x128xi32>
    %c124_i32_105 = arith.constant 124 : i32
    %234 = tpu.dynamic_rotate %229 by %c124_i32_105 dim 1 : vector<4x128xf32>, i32 -> vector<4x128xf32>
    %c4_i32_106 = arith.constant 4 : i32
    %235 = tpu.dynamic_rotate %229 by %c4_i32_106 dim 1 : vector<4x128xf32>, i32 -> vector<4x128xf32>
    %236 = arith.select %233, %234, %235 : vector<4x128xi1>, vector<4x128xf32>
    %237 = arith.addf %229, %236 : vector<4x128xf32>
    %c8_i32_107 = arith.constant 8 : i32
    %238 = vector.broadcast %c8_i32_107 : i32 to vector<4x128xi32>
    %239 = arith.andi %4, %238 : vector<4x128xi32>
    %c0_i32_108 = arith.constant 0 : i32
    %240 = vector.broadcast %c0_i32_108 : i32 to vector<4x128xi32>
    %241 = arith.cmpi eq, %239, %240 : vector<4x128xi32>
    %c120_i32_109 = arith.constant 120 : i32
    %242 = tpu.dynamic_rotate %237 by %c120_i32_109 dim 1 : vector<4x128xf32>, i32 -> vector<4x128xf32>
    %c8_i32_110 = arith.constant 8 : i32
    %243 = tpu.dynamic_rotate %237 by %c8_i32_110 dim 1 : vector<4x128xf32>, i32 -> vector<4x128xf32>
    %244 = arith.select %241, %242, %243 : vector<4x128xi1>, vector<4x128xf32>
    %245 = arith.addf %237, %244 : vector<4x128xf32>
    %c8_111 = arith.constant 8 : index
    %c40_112 = arith.constant 40 : index
    %246 = vector.load %arg2[%c8_111, %c40_112] : memref<24x128xf32, #tpu.memory_space<vmem>>, vector<4x1xf32>
    %247 = vector.broadcast %246 : vector<4x1xf32> to vector<4x128xf32>
    %248 = arith.addf %245, %247 : vector<4x128xf32>
    %c0_113 = arith.constant 0 : index
    %c0_114 = arith.constant 0 : index
    %249 = vector.load %arg3[%c0_113, %c0_114] : memref<4x128xf32, #tpu.memory_space<vmem>>, vector<4x128xf32>
    tpu.vector_store %arg3[%c0_113, %c0_114], %248 {strides = array<i32>} : memref<4x128xf32, #tpu.memory_space<vmem>>, vector<4x128xf32>,
    return
  }
  func.func @transform_0(%arg0: i32) -> (i32, i32) {
    %c0_i32 = arith.constant 0 : i32
    %c0_i32_0 = arith.constant 0 : i32
    return %c0_i32, %arg0 : i32, i32
  }
  func.func @transform_1(%arg0: i32) -> (i32, i32) {
    %c0_i32 = arith.constant 0 : i32
    %c0_i32_0 = arith.constant 0 : i32
    %c0_i32_1 = arith.constant 0 : i32
    return %c0_i32, %c0_i32_0 : i32, i32
  }
  func.func @transform_2(%arg0: i32) -> (i32, i32) {
    %c0_i32 = arith.constant 0 : i32
    %c0_i32_0 = arith.constant 0 : i32
    return %c0_i32, %arg0 : i32, i32
  }
}

</mosaic_0001>

<llo_original>
// kernel: squeeze.5
$region0: #{squeeze.5}
  %s0 = inlined_call_operand.vmem [shape: f32[16,16,1], index: 0, kind: input, shape index: {}]
  %s1 = inlined_call_operand.vmem [shape: f32[1,256], index: 1, kind: output, shape index: {}]
  $region1: #{squeeze.5} parent=0
    #allocation0 [shape = 'u8[8192]{0}', space=vmem, size = 0x2000, scoped, tag = 'scoped mem for output reshape']
    %s2 = smov 3
    %v3 = vld [vmem:[%s0] ss:$8 sm:%s2]
    %vm4 = vcmask 130048
    %5 = vst.msk [vmem:[#allocation0] ss:$8 sm:$0x3] %vm4, %v3
    %s6 = scalar_lea.vmem %s0, 7
    %s7 = smov 3
    %v8 = vld [vmem:[%s6] ss:$8 sm:%s7]
    %9 = vrot.lane.b32.xlu0 %v8, 112
    %v10 = vpop.permute.xlu0 %9
    %vm11 = vcmask 1048448
    %12 = vst.msk [vmem:[#allocation0] ss:$8 sm:$0x3] %vm11, %v10
    %s13 = scalar_lea.vmem %s0, 6
    %s14 = smov 3
    %v15 = vld [vmem:[%s13] ss:$8 sm:%s14]
    %16 = vrot.lane.b32.xlu0 %v15, 96
    %v17 = vpop.permute.xlu0 %16
    %vm18 = vcmask 917248
    %19 = vst.msk [vmem:[#allocation0] ss:$8 sm:$0x3] %vm18, %v17
    %s20 = scalar_lea.vmem %s0, 5
    %s21 = smov 3
    %v22 = vld [vmem:[%s20] ss:$8 sm:%s21]
    %23 = vrot.lane.b32.xlu0 %v22, 80
    %v24 = vpop.permute.xlu0 %23
    %vm25 = vcmask 786048
    %26 = vst.msk [vmem:[#allocation0] ss:$8 sm:$0x3] %vm25, %v24
    %s27 = scalar_lea.vmem %s0, 4
    %s28 = smov 3
    %v29 = vld [vmem:[%s27] ss:$8 sm:%s28]
    %30 = vrot.lane.b32.xlu0 %v29, 64
    %v31 = vpop.permute.xlu0 %30
    %vm32 = vcmask 654848
    %33 = vst.msk [vmem:[#allocation0] ss:$8 sm:$0x3] %vm32, %v31
    %s34 = scalar_lea.vmem %s0, 3
    %s35 = smov 3
    %v36 = vld [vmem:[%s34] ss:$8 sm:%s35]
    %37 = vrot.lane.b32.xlu0 %v36, 48
    %v38 = vpop.permute.xlu0 %37
    %vm39 = vcmask 523648
    %40 = vst.msk [vmem:[#allocation0] ss:$8 sm:$0x3] %vm39, %v38
    %s41 = scalar_lea.vmem %s0, 2
    %s42 = smov 3
    %v43 = vld [vmem:[%s41] ss:$8 sm:%s42]
    %44 = vrot.lane.b32.xlu0 %v43, 32
    %v45 = vpop.permute.xlu0 %44
    %vm46 = vcmask 392448
    %47 = vst.msk [vmem:[#allocation0] ss:$8 sm:$0x3] %vm46, %v45
    %s48 = scalar_lea.vmem %s0, 1
    %s49 = smov 3
    %v50 = vld [vmem:[%s48] ss:$8 sm:%s49]
    %51 = vrot.lane.b32.xlu0 %v50, 16
    %v52 = vpop.permute.xlu0 %51
    %vm53 = vcmask 261248
    %54 = vst.msk [vmem:[#allocation0] ss:$8 sm:$0x3] %vm53, %v52
    %s56 = sshll.u32 1, 1
    %s57 = ssub.s32 %s56, 1
    %v59 = vld [vmem:[#allocation0] sm:%s57]
    %s60 = sshll.u32 1, 1
    %s61 = ssub.s32 %s60, 1
    %62 = vst [vmem:[%s1] sm:%s61] %v59
    %s63 = scalar_lea.vmem [#allocation0], 8
    %v64 = vld [vmem:[%s63] sm:%s57]
    %s65 = sshll.u32 1, 1
    %s66 = ssub.s32 %s65, 1
    %s67 = scalar_lea.vmem %s1, 1
    %68 = vst [vmem:[%s67] sm:%s66] %v64

// kernel: _lambda_.1
$region0: #{_lambda_.1}
  #allocation0 [shape = 'u32[]', space=smem, size = 0x4, offset = 0x4, fixed_abs, tag = 'smem constant byte address 0x4 - core index']
  #allocation1 [shape = 'u32[144,128]{1,0:T(1,128)}', space=vmem, size = 0x12000, scoped, tag = 'internal scratch']
  %s0 = inlined_call_operand.vmem [shape: f32[3,256], index: 0, kind: input, shape index: {}]
  %s1 = inlined_call_operand.vmem [shape: f32[24,128], index: 1, kind: input, shape index: {}]
  %s2 = inlined_call_operand.vmem [shape: f32[4,256], index: 2, kind: output, shape index: {}]
  %s3 = sld [smem:[#allocation0]]
  $region41: #{_lambda_.1} parent=0
    _
  %s5 = ssub.s32 1, %s3
  %s6 = scalar_select 0, %s5, %s3
  loop: start=0, step=1, limit=4
  $region2: #{_lambda_.1} parent=0 // loop_pre_header
    _
  $region3: #{_lambda_.1} parent=0 // loop_header
    %s8 = sphi 0, %s12
    %p9 = scmp.ge.s32.totalorder %s8, 4
    %s18 = sphi 0, %s20
    %s21 = sphi 0, %s18
    %s22 = sphi 0, %s21
    %s38 = sphi 0, %s22
    %s42 = sphi 0, %s42
    %s44 = sphi 0, %s42
    %s45 = sphi 0, %s44
    %s59 = sphi 0, %s45
    %s65 = sphi 0, %s67
    %s68 = sphi 0, %s65
    %s69 = sphi 0, %s68
    %s85 = sphi 0, %s69
  $region4: #{_lambda_.1} parent=0 // loop_header_branch
    %11 = sbr.rel (%p9) target = $region8
  $region5: #{_lambda_.1} parent=0 // loop_body
    %s13 = ssub.s32 %s8, 1
    %s14 = ssub.s32 %s8, 2
    %s15 = sadd.s32 %s8, 1
    %s16 = ssub.s32 %s8, %s15
    %p17 = scmp.eq.s32.totalorder %s16, 0
    %s19 = sadd.s32 %s18, 1
    %s20 = scalar_select %p17, %s18, %s19
    %p23 = pneg %p17
    %p24 = scmp.eq.s32.totalorder %s8, 1
    %p25 = por %p23, %p24
    %p26 = scmp.ne.s32.totalorder %s18, %s21
    %p27 = scmp.eq.s32.totalorder %s8, 0
    %p28 = por %p26, %p27
    %p29 = scmp.ne.s32.totalorder %s18, %s21
    %p30 = scmp.eq.s32.totalorder %s13, 1
    %p31 = por %p29, %p30
    %p32 = scmp.ne.s32.totalorder %s21, %s22
    %p33 = scmp.eq.s32.totalorder %s13, 0
    %p34 = por %p32, %p33
    %p35 = scmp.ne.s32.totalorder %s21, %s22
    %p36 = scmp.eq.s32.totalorder %s14, 1
    %p37 = por %p35, %p36
    %p39 = scmp.ne.s32.totalorder %s22, %s38
    %p40 = scmp.eq.s32.totalorder %s14, 0
    %p41 = por %p39, %p40
    %s43 = sadd.s32 %s42, 1
    %p46 = scmp.eq.s32.totalorder %s8, 1
    %p47 = scmp.ne.s32.totalorder %s42, %s44
    %p48 = scmp.eq.s32.totalorder %s8, 0
    %p49 = por %p47, %p48
    %p50 = scmp.ne.s32.totalorder %s42, %s44
    %p51 = scmp.eq.s32.totalorder %s13, 1
    %p52 = por %p50, %p51
    %p53 = scmp.ne.s32.totalorder %s44, %s45
    %p54 = scmp.eq.s32.totalorder %s13, 0
    %p55 = por %p53, %p54
    %p56 = scmp.ne.s32.totalorder %s44, %s45
    %p57 = scmp.eq.s32.totalorder %s14, 1
    %p58 = por %p56, %p57
    %p60 = scmp.ne.s32.totalorder %s45, %s59
    %p61 = scmp.eq.s32.totalorder %s14, 0
    %p62 = por %p60, %p61
    %s63 = ssub.s32 %s8, %s15
    %p64 = scmp.eq.s32.totalorder %s63, 0
    %s66 = sadd.s32 %s65, 1
    %s67 = scalar_select %p64, %s65, %s66
    %p70 = pneg %p64
    %p71 = scmp.eq.s32.totalorder %s8, 1
    %p72 = por %p70, %p71
    %p73 = scmp.ne.s32.totalorder %s65, %s68
    %p74 = scmp.eq.s32.totalorder %s8, 0
    %p75 = por %p73, %p74
    %p76 = scmp.ne.s32.totalorder %s65, %s68
    %p77 = scmp.eq.s32.totalorder %s13, 1
    %p78 = por %p76, %p77
    %p79 = scmp.ne.s32.totalorder %s68, %s69
    %p80 = scmp.eq.s32.totalorder %s13, 0
    %p81 = por %p79, %p80
    %p82 = scmp.ne.s32.totalorder %s68, %s69
    %p83 = scmp.eq.s32.totalorder %s14, 1
    %p84 = por %p82, %p83
    %p86 = scmp.ne.s32.totalorder %s69, %s85
    %p87 = scmp.eq.s32.totalorder %s14, 0
    %p88 = por %p86, %p87
    %p89 = scmp.le.s32.totalorder 1, %s8
    %p90 = scmp.lt.s32.totalorder %s8, 3
    %p91 = pnand %p89, %p90
    %p92 = pneg %p91
    // Predicated region
    $region9: #{_lambda_.1} parent=5 // pred_check
      _
    $region10: #{_lambda_.1} parent=5 // pred_check_branch
      %94 = sbr.rel (%p91) target = $region12
    $region11: #{_lambda_.1} parent=5 // pred_region
      %s95 = ssub.s32 %s8, 1
      // Predicated region
      $region13: #{_lambda_.1} parent=11 // pred_check
        %p96 = pneg %p55
      $region14: #{_lambda_.1} parent=11 // pred_check_branch
        %98 = sbr.rel (%p96) target = $region16
      $region15: #{_lambda_.1} parent=11 // pred_region
        _
      $region16: #{_lambda_.1} parent=11 // pred_fallthru
        _
    $region12: #{_lambda_.1} parent=5 // pred_fallthru
      _
    %p99 = scmp.lt.s32.totalorder %s8, 2
    // Predicated region
    $region17: #{_lambda_.1} parent=5 // pred_check
      %p100 = pneg %p99
    $region18: #{_lambda_.1} parent=5 // pred_check_branch
      %102 = sbr.rel (%p100) target = $region20
    $region19: #{_lambda_.1} parent=5 // pred_region
      // Predicated region
      $region21: #{_lambda_.1} parent=19 // pred_check
        %p103 = pneg %p28
      $region22: #{_lambda_.1} parent=19 // pred_check_branch
        %105 = sbr.rel (%p103) target = $region24
      $region23: #{_lambda_.1} parent=19 // pred_region
        %p106 = scmp.lt.s32.totalorder %s8, 1
        %s107 = scalar_select %p106, %s8, 1
        %s108 = smul.addr %s107, 4
        %s109 = scalar_lea.vmem %s0, %s108
      $region24: #{_lambda_.1} parent=19 // pred_fallthru
        _
    $region20: #{_lambda_.1} parent=5 // pred_fallthru
      _
    %p110 = scmp.le.s32.totalorder 1, %s8
    %p111 = scmp.lt.s32.totalorder %s8, 3
    %p112 = pnand %p110, %p111
    %p113 = pneg %p112
    // Predicated region
    $region25: #{_lambda_.1} parent=5 // pred_check
      _
    $region26: #{_lambda_.1} parent=5 // pred_check_branch
      %115 = sbr.rel (%p112) target = $region28
    $region27: #{_lambda_.1} parent=5 // pred_region
      %s116 = ssub.s32 %s8, 1
      %p117 = scmp.lt.s32.totalorder %s13, 1
      %s118 = scalar_select %p117, %s13, 1
      %s119 = smul.addr %s118, 4
      %s120 = scalar_lea.vmem %s0, %s119
      %p121 = pneg %p34
      %p122 = pneg %p31
      %p123 = pneg %p55
      %p124 = pneg %p52
      %p125 = pneg %p81
      %p126 = pneg %p78
      %p127 = scmp.lt.s32.totalorder %s13, 1
      %s128 = scalar_select %p127, %s13, 1
      %s129 = smul.addr %s128, 4
      %s130 = scalar_lea.vmem %s2, %s129
      %p131 = scmp.lt.s32.totalorder %s13, 1
      %s132 = scalar_select %p131, %s13, 1
      %s133 = smul.addr %s132, 4
      %s134 = scalar_lea.vmem %s0, %s133
      %p135 = scmp.lt.s32.totalorder %s13, 1
      %s136 = scalar_select %p135, %s13, 1
      %s137 = smul.addr %s136, 4
      %s138 = scalar_lea.vmem %s2, %s137
      %v139 = vlaneseq
      %v140 = vand.u32 %v139, 127
      %v141 = vand.u32 %v140, 15
      %v142 = vld [vmem:[%s134] sm:$0x1]
      %v143 = vld [vmem:[%s134 + $0x1] sm:$0x1]
      %v144 = vld [vmem:[%s134 + $0x2] sm:$0x1]
      %vm145 = vcmp.ge.s32.totalorder %v141, 1
      %146 = vrot.lane.b32.xlu0 %v143, 1
      %v147 = vpop.permute.xlu0 %146
      %v148 = vsel %vm145, %v147, 0.0
      %v149 = vld [vmem:[%s1] sm:$0xf]
      %151 = vset.pattern.permute.xlu0 0
      %152 = vperm.xlu0 %151, %v149
      %v153 = vpop.permute.xlu0 %152
      %v155 = vlaneseq
      %v156 = vshrl.u32 %v155, 7
      %v157 = vsub.s32 0, %v156
      %v158 = vrot.slane %v148, %v157
      %v159 = vmul.f32 %v153, %v158
      %160 = vset.pattern.permute.xlu0 8
      %161 = vperm.xlu0 %160, %v149
      %v162 = vpop.permute.xlu0 %161
      %v164 = vlaneseq
      %v165 = vshrl.u32 %v164, 7
      %v166 = vsub.s32 0, %v165
      %v167 = vrot.slane %v142, %v166
      %v168 = vmul.f32 %v162, %v167
      %v169 = vadd.f32 %v159, %v168
      %170 = vset.pattern.permute.xlu0 16
      %171 = vperm.xlu0 %170, %v149
      %v172 = vpop.permute.xlu0 %171
      %v174 = vlaneseq
      %v175 = vshrl.u32 %v174, 7
      %v176 = vsub.s32 0, %v175
      %v177 = vrot.slane %v143, %v176
      %v178 = vmul.f32 %v172, %v177
      %v179 = vadd.f32 %v169, %v178
      %180 = vset.pattern.permute.xlu0 24
      %181 = vperm.xlu0 %180, %v149
      %v182 = vpop.permute.xlu0 %181
      %v184 = vlaneseq
      %v185 = vshrl.u32 %v184, 7
      %v186 = vsub.s32 0, %v185
      %v187 = vrot.slane %v144, %v186
      %v188 = vmul.f32 %v182, %v187
      %189 = vset.pattern.permute.xlu0 32
      %190 = vperm.xlu0 %189, %v149
      %v191 = vpop.permute.xlu0 %190
      %v193 = vadd.f32 %v188, %v191
      %vm194 = vcmp.gt.f32.partialorder %v193, 0.0
      %v195 = vmul.f32 %v193, 0.01
      %v196 = vsel %vm194, %v193, %v195
      %v197 = vand.u32 %v141, 4
      %vm198 = vcmp.eq.s32.totalorder %v197, 0
      %199 = vrot.lane.b32.xlu0 %v196, 124
      %v200 = vpop.permute.xlu0 %199
      %201 = vrot.lane.b32.xlu0 %v196, 4
      %v202 = vpop.permute.xlu0 %201
      %v203 = vsel %vm198, %v200, %v202
      %v204 = vmax.f32 %v196, %v203
      %v205 = vand.u32 %v141, 8
      %vm206 = vcmp.eq.s32.totalorder %v205, 0
      %207 = vrot.lane.b32.xlu0 %v204, 120
      %v208 = vpop.permute.xlu0 %207
      %209 = vrot.lane.b32.xlu0 %v204, 8
      %v210 = vpop.permute.xlu0 %209
      %v211 = vsel %vm206, %v208, %v210
      %v212 = vmax.f32 %v204, %v211
      %v213 = vadd.f32 %v196, %v203
      %214 = vrot.lane.b32.xlu0 %v213, 120
      %v215 = vpop.permute.xlu0 %214
      %216 = vrot.lane.b32.xlu0 %v213, 8
      %v217 = vpop.permute.xlu0 %216
      %v218 = vsel %vm206, %v215, %v217
      %v219 = vadd.f32 %v213, %v218
      %v220 = vmul.f32 %v219, 0.25
      %221 = vrot.lane.b32.xlu0 %v149, 88
      %v222 = vpop.permute.xlu0 %221
      %vm223 = vcmask 31744
      %v224 = vsel %vm223, %v222, 0
      %vm226 = vcmask 1043456
      %v228 = vsel %vm226, %v220, 0
      %230 = vmatprep.subr.mxu0 0.0
      %231 = vmatpush1.msra.mxu0 0.0
      %232 = vmatprep.subr.mxu0 0.0
      %233 = vmatpush1.msra.mxu0 0.0
      %234 = vmatprep.subr.mxu0 0.0
      %235 = vmatpush1.msra.mxu0 0.0
      %236 = vmatprep.subr.mxu0 0.0
      %237 = vmatpush1.msra.mxu0 0.0
      %238 = vmatprep.subr.mxu0 0.0
      %239 = vmatpush1.msra.mxu0 0.0
      %240 = vmatprep.subr.mxu0 0.0
      %241 = vmatpush1.msra.mxu0 0.0
      %242 = vmatprep.subr.mxu0 0.0
      %243 = vmatpush1.msra.mxu0 0.0
      %244 = vmatprep.subr.mxu0 0.0
      %245 = vmatpush1.msra.mxu0 0.0
      %246 = vmatprep.subr.mxu0 0.0
      %247 = vmatpush1.msra.mxu0 0.0
      %248 = vmatprep.subr.mxu0 0.0
      %249 = vmatpush1.msra.mxu0 0.0
      %250 = vmatprep.subr.mxu0 0.0
      %251 = vmatpush1.msra.mxu0 0.0
      %252 = vmatprep.subr.mxu0 0.0
      %253 = vmatpush1.msra.mxu0 0.0
      %254 = vmatprep.subr.mxu0 0.0
      %255 = vmatpush1.msra.mxu0 0.0
      %256 = vmatprep.subr.mxu0 0.0
      %257 = vmatpush1.msra.mxu0 0.0
      %258 = vmatprep.subr.mxu0 0.0
      %259 = vmatpush1.msra.mxu0 0.0
      %260 = vmatprep.subr.mxu0 0.0
      %261 = vmatpush1.msra.mxu0 %v228
      %262 = vmatprep.subr.mxu0 0.0
      %263 = vmatpush2.msra.mxu0 0.0
      %264 = vmatprep.subr.mxu0 0.0
      %265 = vmatpush2.msra.mxu0 0.0
      %266 = vmatprep.subr.mxu0 0.0
      %267 = vmatpush2.msra.mxu0 0.0
      %268 = vmatprep.subr.mxu0 0.0
      %269 = vmatpush2.msra.mxu0 0.0
      %270 = vmatprep.subr.mxu0 0.0
      %271 = vmatpush2.msra.mxu0 0.0
      %272 = vmatprep.subr.mxu0 0.0
      %273 = vmatpush2.msra.mxu0 0.0
      %274 = vmatprep.subr.mxu0 0.0
      %275 = vmatpush2.msra.mxu0 0.0
      %276 = vmatprep.subr.mxu0 0.0
      %277 = vmatpush2.msra.mxu0 0.0
      %278 = vmatprep.subr.mxu0 0.0
      %279 = vmatpush2.msra.mxu0 0.0
      %280 = vmatprep.subr.mxu0 0.0
      %281 = vmatpush2.msra.mxu0 0.0
      %282 = vmatprep.subr.mxu0 0.0
      %283 = vmatpush2.msra.mxu0 0.0
      %284 = vmatprep.subr.mxu0 0.0
      %285 = vmatpush2.msra.mxu0 0.0
      %286 = vmatprep.subr.mxu0 0.0
      %287 = vmatpush2.msra.mxu0 0.0
      %288 = vmatprep.subr.mxu0 0.0
      %289 = vmatpush2.msra.mxu0 0.0
      %290 = vmatprep.subr.mxu0 0.0
      %291 = vmatpush2.msra.mxu0 0.0
      %292 = vmatprep.subr.mxu0 0.0
      %293 = vmatpush2.msra.mxu0 0.0
      %294 = vmatprep.mubr.f32.mxu0 0.0
      %295 = vmatmul.mubr.f32.gmra.mxu0 %v224
      %v296 = vpop.f32.mrf.mxu0
      %v297 = vadd.f32 0.0, %v296
      %v298 = vpop.f32.mrf.mxu0
      %299 = vdwg.mxu0
      %v300 = vmax.f32 %v297, 0.0
      %v302 = vsel %vm226, %v212, 0
      %304 = vmatprep.subr.mxu0 0.0
      %305 = vmatpush1.msra.mxu0 0.0
      %306 = vmatprep.subr.mxu0 0.0
      %307 = vmatpush1.msra.mxu0 0.0
      %308 = vmatprep.subr.mxu0 0.0
      %309 = vmatpush1.msra.mxu0 0.0
      %310 = vmatprep.subr.mxu0 0.0
      %311 = vmatpush1.msra.mxu0 0.0
      %312 = vmatprep.subr.mxu0 0.0
      %313 = vmatpush1.msra.mxu0 0.0
      %314 = vmatprep.subr.mxu0 0.0
      %315 = vmatpush1.msra.mxu0 0.0
      %316 = vmatprep.subr.mxu0 0.0
      %317 = vmatpush1.msra.mxu0 0.0
      %318 = vmatprep.subr.mxu0 0.0
      %319 = vmatpush1.msra.mxu0 0.0
      %320 = vmatprep.subr.mxu0 0.0
      %321 = vmatpush1.msra.mxu0 0.0
      %322 = vmatprep.subr.mxu0 0.0
      %323 = vmatpush1.msra.mxu0 0.0
      %324 = vmatprep.subr.mxu0 0.0
      %325 = vmatpush1.msra.mxu0 0.0
      %326 = vmatprep.subr.mxu0 0.0
      %327 = vmatpush1.msra.mxu0 0.0
      %328 = vmatprep.subr.mxu0 0.0
      %329 = vmatpush1.msra.mxu0 0.0
      %330 = vmatprep.subr.mxu0 0.0
      %331 = vmatpush1.msra.mxu0 0.0
      %332 = vmatprep.subr.mxu0 0.0
      %333 = vmatpush1.msra.mxu0 0.0
      %334 = vmatprep.subr.mxu0 0.0
      %335 = vmatpush1.msra.mxu0 %v302
      %336 = vmatprep.subr.mxu0 0.0
      %337 = vmatpush2.msra.mxu0 0.0
      %338 = vmatprep.subr.mxu0 0.0
      %339 = vmatpush2.msra.mxu0 0.0
      %340 = vmatprep.subr.mxu0 0.0
      %341 = vmatpush2.msra.mxu0 0.0
      %342 = vmatprep.subr.mxu0 0.0
      %343 = vmatpush2.msra.mxu0 0.0
      %344 = vmatprep.subr.mxu0 0.0
      %345 = vmatpush2.msra.mxu0 0.0
      %346 = vmatprep.subr.mxu0 0.0
      %347 = vmatpush2.msra.mxu0 0.0
      %348 = vmatprep.subr.mxu0 0.0
      %349 = vmatpush2.msra.mxu0 0.0
      %350 = vmatprep.subr.mxu0 0.0
      %351 = vmatpush2.msra.mxu0 0.0
      %352 = vmatprep.subr.mxu0 0.0
      %353 = vmatpush2.msra.mxu0 0.0
      %354 = vmatprep.subr.mxu0 0.0
      %355 = vmatpush2.msra.mxu0 0.0
      %356 = vmatprep.subr.mxu0 0.0
      %357 = vmatpush2.msra.mxu0 0.0
      %358 = vmatprep.subr.mxu0 0.0
      %359 = vmatpush2.msra.mxu0 0.0
      %360 = vmatprep.subr.mxu0 0.0
      %361 = vmatpush2.msra.mxu0 0.0
      %362 = vmatprep.subr.mxu0 0.0
      %363 = vmatpush2.msra.mxu0 0.0
      %364 = vmatprep.subr.mxu0 0.0
      %365 = vmatpush2.msra.mxu0 0.0
      %366 = vmatprep.subr.mxu0 0.0
      %367 = vmatpush2.msra.mxu0 0.0
      %368 = vmatprep.mubr.f32.mxu0 0.0
      %369 = vmatmul.mubr.f32.gmra.mxu0 %v224
      %v370 = vpop.f32.mrf.mxu0
      %v371 = vadd.f32 0.0, %v370
      %v372 = vpop.f32.mrf.mxu0
      %373 = vdwg.mxu0
      %v374 = vmax.f32 %v371, 0.0
      %v375 = vadd.f32 %v300, %v374
      %376 = vrot.lane.b32.xlu0 %v149, 80
      %v377 = vpop.permute.xlu0 %376
      %v378 = vsel %vm223, %v377, 0
      %v381 = vsel %vm226, %v375, 0
      %383 = vmatprep.subr.mxu0 0.0
      %384 = vmatpush1.msra.mxu0 0.0
      %385 = vmatprep.subr.mxu0 0.0
      %386 = vmatpush1.msra.mxu0 0.0
      %387 = vmatprep.subr.mxu0 0.0
      %388 = vmatpush1.msra.mxu0 0.0
      %389 = vmatprep.subr.mxu0 0.0
      %390 = vmatpush1.msra.mxu0 0.0
      %391 = vmatprep.subr.mxu0 0.0
      %392 = vmatpush1.msra.mxu0 0.0
      %393 = vmatprep.subr.mxu0 0.0
      %394 = vmatpush1.msra.mxu0 0.0
      %395 = vmatprep.subr.mxu0 0.0
      %396 = vmatpush1.msra.mxu0 0.0
      %397 = vmatprep.subr.mxu0 0.0
      %398 = vmatpush1.msra.mxu0 0.0
      %399 = vmatprep.subr.mxu0 0.0
      %400 = vmatpush1.msra.mxu0 0.0
      %401 = vmatprep.subr.mxu0 0.0
      %402 = vmatpush1.msra.mxu0 0.0
      %403 = vmatprep.subr.mxu0 0.0
      %404 = vmatpush1.msra.mxu0 0.0
      %405 = vmatprep.subr.mxu0 0.0
      %406 = vmatpush1.msra.mxu0 0.0
      %407 = vmatprep.subr.mxu0 0.0
      %408 = vmatpush1.msra.mxu0 0.0
      %409 = vmatprep.subr.mxu0 0.0
      %410 = vmatpush1.msra.mxu0 0.0
      %411 = vmatprep.subr.mxu0 0.0
      %412 = vmatpush1.msra.mxu0 0.0
      %413 = vmatprep.subr.mxu0 0.0
      %414 = vmatpush1.msra.mxu0 %v381
      %415 = vmatprep.subr.mxu0 0.0
      %416 = vmatpush2.msra.mxu0 0.0
      %417 = vmatprep.subr.mxu0 0.0
      %418 = vmatpush2.msra.mxu0 0.0
      %419 = vmatprep.subr.mxu0 0.0
      %420 = vmatpush2.msra.mxu0 0.0
      %421 = vmatprep.subr.mxu0 0.0
      %422 = vmatpush2.msra.mxu0 0.0
      %423 = vmatprep.subr.mxu0 0.0
      %424 = vmatpush2.msra.mxu0 0.0
      %425 = vmatprep.subr.mxu0 0.0
      %426 = vmatpush2.msra.mxu0 0.0
      %427 = vmatprep.subr.mxu0 0.0
      %428 = vmatpush2.msra.mxu0 0.0
      %429 = vmatprep.subr.mxu0 0.0
      %430 = vmatpush2.msra.mxu0 0.0
      %431 = vmatprep.subr.mxu0 0.0
      %432 = vmatpush2.msra.mxu0 0.0
      %433 = vmatprep.subr.mxu0 0.0
      %434 = vmatpush2.msra.mxu0 0.0
      %435 = vmatprep.subr.mxu0 0.0
      %436 = vmatpush2.msra.mxu0 0.0
      %437 = vmatprep.subr.mxu0 0.0
      %438 = vmatpush2.msra.mxu0 0.0
      %439 = vmatprep.subr.mxu0 0.0
      %440 = vmatpush2.msra.mxu0 0.0
      %441 = vmatprep.subr.mxu0 0.0
      %442 = vmatpush2.msra.mxu0 0.0
      %443 = vmatprep.subr.mxu0 0.0
      %444 = vmatpush2.msra.mxu0 0.0
      %445 = vmatprep.subr.mxu0 0.0
      %446 = vmatpush2.msra.mxu0 0.0
      %447 = vmatprep.mubr.f32.mxu0 0.0
      %448 = vmatmul.mubr.f32.gmra.mxu0 %v378
      %v449 = vpop.f32.mrf.mxu0
      %v450 = vadd.f32 0.0, %v449
      %v451 = vpop.f32.mrf.mxu0
      %452 = vdwg.mxu0
      %453 = vrot.lane.b32.xlu0 %v179, 127
      %v454 = vpop.permute.xlu0 %453
      %vm455 = vcmp.le.s32.totalorder %v141, 14
      %v456 = vsel %vm455, %v454, %v179
      %457 = vrot.lane.b32.xlu0 %v179, 1
      %v458 = vpop.permute.xlu0 %457
      %v459 = vsel %vm145, %v458, %v179
      %v460 = vmax.f32 %v456, %v459
      %461 = vrot.lane.b32.xlu0 %v179, 126
      %v462 = vpop.permute.xlu0 %461
      %vm463 = vcmp.le.s32.totalorder %v141, 13
      %v464 = vsel %vm463, %v462, %v179
      %465 = vrot.lane.b32.xlu0 %v179, 2
      %v466 = vpop.permute.xlu0 %465
      %vm467 = vcmp.ge.s32.totalorder %v141, 2
      %v468 = vsel %vm467, %v466, %v179
      %v469 = vmax.f32 %v464, %v468
      %v470 = vmax.f32 %v460, %v469
      %v471 = vmax.f32 %v179, %v470
      %472 = vrot.lane.b32.xlu0 %v471, 127
      %v473 = vpop.permute.xlu0 %472
      %v474 = vsel %vm455, %v473, %v471
      %475 = vrot.lane.b32.xlu0 %v471, 1
      %v476 = vpop.permute.xlu0 %475
      %v477 = vsel %vm145, %v476, %v471
      %v478 = vmax.f32 %v474, %v477
      %479 = vrot.lane.b32.xlu0 %v471, 126
      %v480 = vpop.permute.xlu0 %479
      %v481 = vsel %vm463, %v480, %v471
      %482 = vrot.lane.b32.xlu0 %v471, 2
      %v483 = vpop.permute.xlu0 %482
      %v484 = vsel %vm467, %v483, %v471
      %v485 = vmax.f32 %v481, %v484
      %v486 = vmax.f32 %v478, %v485
      %v487 = vmax.f32 %v471, %v486
      %488 = vrot.lane.b32.xlu0 %v487, 127
      %v489 = vpop.permute.xlu0 %488
      %v490 = vsel %vm455, %v489, %v487
      %491 = vrot.lane.b32.xlu0 %v487, 1
      %v492 = vpop.permute.xlu0 %491
      %v493 = vsel %vm145, %v492, %v487
      %v494 = vmax.f32 %v490, %v493
      %495 = vrot.lane.b32.xlu0 %v487, 126
      %v496 = vpop.permute.xlu0 %495
      %v497 = vsel %vm463, %v496, %v487
      %498 = vrot.lane.b32.xlu0 %v487, 2
      %v499 = vpop.permute.xlu0 %498
      %v500 = vsel %vm467, %v499, %v487
      %v501 = vmax.f32 %v497, %v500
      %v502 = vmax.f32 %v494, %v501
      %v503 = vmax.f32 %v487, %v502
      %504 = vrot.lane.b32.xlu0 %v149, 64
      %v505 = vpop.permute.xlu0 %504
      %v506 = vsel %vm223, %v505, 0
      %v509 = vsel %vm226, %v471, 0
      %511 = vmatprep.subr.mxu0 0.0
      %512 = vmatpush1.msra.mxu0 0.0
      %513 = vmatprep.subr.mxu0 0.0
      %514 = vmatpush1.msra.mxu0 0.0
      %515 = vmatprep.subr.mxu0 0.0
      %516 = vmatpush1.msra.mxu0 0.0
      %517 = vmatprep.subr.mxu0 0.0
      %518 = vmatpush1.msra.mxu0 0.0
      %519 = vmatprep.subr.mxu0 0.0
      %520 = vmatpush1.msra.mxu0 0.0
      %521 = vmatprep.subr.mxu0 0.0
      %522 = vmatpush1.msra.mxu0 0.0
      %523 = vmatprep.subr.mxu0 0.0
      %524 = vmatpush1.msra.mxu0 0.0
      %525 = vmatprep.subr.mxu0 0.0
      %526 = vmatpush1.msra.mxu0 0.0
      %527 = vmatprep.subr.mxu0 0.0
      %528 = vmatpush1.msra.mxu0 0.0
      %529 = vmatprep.subr.mxu0 0.0
      %530 = vmatpush1.msra.mxu0 0.0
      %531 = vmatprep.subr.mxu0 0.0
      %532 = vmatpush1.msra.mxu0 0.0
      %533 = vmatprep.subr.mxu0 0.0
      %534 = vmatpush1.msra.mxu0 0.0
      %535 = vmatprep.subr.mxu0 0.0
      %536 = vmatpush1.msra.mxu0 0.0
      %537 = vmatprep.subr.mxu0 0.0
      %538 = vmatpush1.msra.mxu0 0.0
      %539 = vmatprep.subr.mxu0 0.0
      %540 = vmatpush1.msra.mxu0 0.0
      %541 = vmatprep.subr.mxu0 0.0
      %542 = vmatpush1.msra.mxu0 %v509
      %543 = vmatprep.subr.mxu0 0.0
      %544 = vmatpush2.msra.mxu0 0.0
      %545 = vmatprep.subr.mxu0 0.0
      %546 = vmatpush2.msra.mxu0 0.0
      %547 = vmatprep.subr.mxu0 0.0
      %548 = vmatpush2.msra.mxu0 0.0
      %549 = vmatprep.subr.mxu0 0.0
      %550 = vmatpush2.msra.mxu0 0.0
      %551 = vmatprep.subr.mxu0 0.0
      %552 = vmatpush2.msra.mxu0 0.0
      %553 = vmatprep.subr.mxu0 0.0
      %554 = vmatpush2.msra.mxu0 0.0
      %555 = vmatprep.subr.mxu0 0.0
      %556 = vmatpush2.msra.mxu0 0.0
      %557 = vmatprep.subr.mxu0 0.0
      %558 = vmatpush2.msra.mxu0 0.0
      %559 = vmatprep.subr.mxu0 0.0
      %560 = vmatpush2.msra.mxu0 0.0
      %561 = vmatprep.subr.mxu0 0.0
      %562 = vmatpush2.msra.mxu0 0.0
      %563 = vmatprep.subr.mxu0 0.0
      %564 = vmatpush2.msra.mxu0 0.0
      %565 = vmatprep.subr.mxu0 0.0
      %566 = vmatpush2.msra.mxu0 0.0
      %567 = vmatprep.subr.mxu0 0.0
      %568 = vmatpush2.msra.mxu0 0.0
      %569 = vmatprep.subr.mxu0 0.0
      %570 = vmatpush2.msra.mxu0 0.0
      %571 = vmatprep.subr.mxu0 0.0
      %572 = vmatpush2.msra.mxu0 0.0
      %573 = vmatprep.subr.mxu0 0.0
      %574 = vmatpush2.msra.mxu0 0.0
      %575 = vmatprep.mubr.f32.mxu0 0.0
      %576 = vmatmul.mubr.f32.gmra.mxu0 %v506
      %v577 = vpop.f32.mrf.mxu0
      %v578 = vadd.f32 0.0, %v577
      %v579 = vpop.f32.mrf.mxu0
      %580 = vdwg.mxu0
      %581 = vrot.lane.b32.xlu0 %v149, 72
      %v582 = vpop.permute.xlu0 %581
      %v583 = vsel %vm223, %v582, 0
      %v586 = vsel %vm226, %v179, 0
      %588 = vmatprep.subr.mxu0 0.0
      %589 = vmatpush1.msra.mxu0 0.0
      %590 = vmatprep.subr.mxu0 0.0
      %591 = vmatpush1.msra.mxu0 0.0
      %592 = vmatprep.subr.mxu0 0.0
      %593 = vmatpush1.msra.mxu0 0.0
      %594 = vmatprep.subr.mxu0 0.0
      %595 = vmatpush1.msra.mxu0 0.0
      %596 = vmatprep.subr.mxu0 0.0
      %597 = vmatpush1.msra.mxu0 0.0
      %598 = vmatprep.subr.mxu0 0.0
      %599 = vmatpush1.msra.mxu0 0.0
      %600 = vmatprep.subr.mxu0 0.0
      %601 = vmatpush1.msra.mxu0 0.0
      %602 = vmatprep.subr.mxu0 0.0
      %603 = vmatpush1.msra.mxu0 0.0
      %604 = vmatprep.subr.mxu0 0.0
      %605 = vmatpush1.msra.mxu0 0.0
      %606 = vmatprep.subr.mxu0 0.0
      %607 = vmatpush1.msra.mxu0 0.0
      %608 = vmatprep.subr.mxu0 0.0
      %609 = vmatpush1.msra.mxu0 0.0
      %610 = vmatprep.subr.mxu0 0.0
      %611 = vmatpush1.msra.mxu0 0.0
      %612 = vmatprep.subr.mxu0 0.0
      %613 = vmatpush1.msra.mxu0 0.0
      %614 = vmatprep.subr.mxu0 0.0
      %615 = vmatpush1.msra.mxu0 0.0
      %616 = vmatprep.subr.mxu0 0.0
      %617 = vmatpush1.msra.mxu0 0.0
      %618 = vmatprep.subr.mxu0 0.0
      %619 = vmatpush1.msra.mxu0 %v586
      %620 = vmatprep.subr.mxu0 0.0
      %621 = vmatpush2.msra.mxu0 0.0
      %622 = vmatprep.subr.mxu0 0.0
      %623 = vmatpush2.msra.mxu0 0.0
      %624 = vmatprep.subr.mxu0 0.0
      %625 = vmatpush2.msra.mxu0 0.0
      %626 = vmatprep.subr.mxu0 0.0
      %627 = vmatpush2.msra.mxu0 0.0
      %628 = vmatprep.subr.mxu0 0.0
      %629 = vmatpush2.msra.mxu0 0.0
      %630 = vmatprep.subr.mxu0 0.0
      %631 = vmatpush2.msra.mxu0 0.0
      %632 = vmatprep.subr.mxu0 0.0
      %633 = vmatpush2.msra.mxu0 0.0
      %634 = vmatprep.subr.mxu0 0.0
      %635 = vmatpush2.msra.mxu0 0.0
      %636 = vmatprep.subr.mxu0 0.0
      %637 = vmatpush2.msra.mxu0 0.0
      %638 = vmatprep.subr.mxu0 0.0
      %639 = vmatpush2.msra.mxu0 0.0
      %640 = vmatprep.subr.mxu0 0.0
      %641 = vmatpush2.msra.mxu0 0.0
      %642 = vmatprep.subr.mxu0 0.0
      %643 = vmatpush2.msra.mxu0 0.0
      %644 = vmatprep.subr.mxu0 0.0
      %645 = vmatpush2.msra.mxu0 0.0
      %646 = vmatprep.subr.mxu0 0.0
      %647 = vmatpush2.msra.mxu0 0.0
      %648 = vmatprep.subr.mxu0 0.0
      %649 = vmatpush2.msra.mxu0 0.0
      %650 = vmatprep.subr.mxu0 0.0
      %651 = vmatpush2.msra.mxu0 0.0
      %652 = vmatprep.mubr.f32.mxu0 0.0
      %653 = vmatmul.mubr.f32.gmra.mxu0 %v583
      %v654 = vpop.f32.mrf.mxu0
      %v655 = vadd.f32 %v578, %v654
      %v656 = vpop.f32.mrf.mxu0
      %657 = vdwg.mxu0
      %658 = vrot.lane.b32.xlu0 %v149, 56
      %v659 = vpop.permute.xlu0 %658
      %v660 = vsel %vm223, %v659, 0
      %v663 = vsel %vm226, %v487, 0
      %665 = vmatprep.subr.mxu0 0.0
      %666 = vmatpush1.msra.mxu0 0.0
      %667 = vmatprep.subr.mxu0 0.0
      %668 = vmatpush1.msra.mxu0 0.0
      %669 = vmatprep.subr.mxu0 0.0
      %670 = vmatpush1.msra.mxu0 0.0
      %671 = vmatprep.subr.mxu0 0.0
      %672 = vmatpush1.msra.mxu0 0.0
      %673 = vmatprep.subr.mxu0 0.0
      %674 = vmatpush1.msra.mxu0 0.0
      %675 = vmatprep.subr.mxu0 0.0
      %676 = vmatpush1.msra.mxu0 0.0
      %677 = vmatprep.subr.mxu0 0.0
      %678 = vmatpush1.msra.mxu0 0.0
      %679 = vmatprep.subr.mxu0 0.0
      %680 = vmatpush1.msra.mxu0 0.0
      %681 = vmatprep.subr.mxu0 0.0
      %682 = vmatpush1.msra.mxu0 0.0
      %683 = vmatprep.subr.mxu0 0.0
      %684 = vmatpush1.msra.mxu0 0.0
      %685 = vmatprep.subr.mxu0 0.0
      %686 = vmatpush1.msra.mxu0 0.0
      %687 = vmatprep.subr.mxu0 0.0
      %688 = vmatpush1.msra.mxu0 0.0
      %689 = vmatprep.subr.mxu0 0.0
      %690 = vmatpush1.msra.mxu0 0.0
      %691 = vmatprep.subr.mxu0 0.0
      %692 = vmatpush1.msra.mxu0 0.0
      %693 = vmatprep.subr.mxu0 0.0
      %694 = vmatpush1.msra.mxu0 0.0
      %695 = vmatprep.subr.mxu0 0.0
      %696 = vmatpush1.msra.mxu0 %v663
      %697 = vmatprep.subr.mxu0 0.0
      %698 = vmatpush2.msra.mxu0 0.0
      %699 = vmatprep.subr.mxu0 0.0
      %700 = vmatpush2.msra.mxu0 0.0
      %701 = vmatprep.subr.mxu0 0.0
      %702 = vmatpush2.msra.mxu0 0.0
      %703 = vmatprep.subr.mxu0 0.0
      %704 = vmatpush2.msra.mxu0 0.0
      %705 = vmatprep.subr.mxu0 0.0
      %706 = vmatpush2.msra.mxu0 0.0
      %707 = vmatprep.subr.mxu0 0.0
      %708 = vmatpush2.msra.mxu0 0.0
      %709 = vmatprep.subr.mxu0 0.0
      %710 = vmatpush2.msra.mxu0 0.0
      %711 = vmatprep.subr.mxu0 0.0
      %712 = vmatpush2.msra.mxu0 0.0
      %713 = vmatprep.subr.mxu0 0.0
      %714 = vmatpush2.msra.mxu0 0.0
      %715 = vmatprep.subr.mxu0 0.0
      %716 = vmatpush2.msra.mxu0 0.0
      %717 = vmatprep.subr.mxu0 0.0
      %718 = vmatpush2.msra.mxu0 0.0
      %719 = vmatprep.subr.mxu0 0.0
      %720 = vmatpush2.msra.mxu0 0.0
      %721 = vmatprep.subr.mxu0 0.0
      %722 = vmatpush2.msra.mxu0 0.0
      %723 = vmatprep.subr.mxu0 0.0
      %724 = vmatpush2.msra.mxu0 0.0
      %725 = vmatprep.subr.mxu0 0.0
      %726 = vmatpush2.msra.mxu0 0.0
      %727 = vmatprep.subr.mxu0 0.0
      %728 = vmatpush2.msra.mxu0 0.0
      %729 = vmatprep.mubr.f32.mxu0 0.0
      %730 = vmatmul.mubr.f32.gmra.mxu0 %v660
      %v731 = vpop.f32.mrf.mxu0
      %v732 = vadd.f32 0.0, %v731
      %v733 = vpop.f32.mrf.mxu0
      %734 = vdwg.mxu0
      %v735 = vadd.f32 %v655, %v732
      %736 = vrot.lane.b32.xlu0 %v149, 48
      %v737 = vpop.permute.xlu0 %736
      %v738 = vsel %vm223, %v737, 0
      %v741 = vsel %vm226, %v503, 0
      %743 = vmatprep.subr.mxu0 0.0
      %744 = vmatpush1.msra.mxu0 0.0
      %745 = vmatprep.subr.mxu0 0.0
      %746 = vmatpush1.msra.mxu0 0.0
      %747 = vmatprep.subr.mxu0 0.0
      %748 = vmatpush1.msra.mxu0 0.0
      %749 = vmatprep.subr.mxu0 0.0
      %750 = vmatpush1.msra.mxu0 0.0
      %751 = vmatprep.subr.mxu0 0.0
      %752 = vmatpush1.msra.mxu0 0.0
      %753 = vmatprep.subr.mxu0 0.0
      %754 = vmatpush1.msra.mxu0 0.0
      %755 = vmatprep.subr.mxu0 0.0
      %756 = vmatpush1.msra.mxu0 0.0
      %757 = vmatprep.subr.mxu0 0.0
      %758 = vmatpush1.msra.mxu0 0.0
      %759 = vmatprep.subr.mxu0 0.0
      %760 = vmatpush1.msra.mxu0 0.0
      %761 = vmatprep.subr.mxu0 0.0
      %762 = vmatpush1.msra.mxu0 0.0
      %763 = vmatprep.subr.mxu0 0.0
      %764 = vmatpush1.msra.mxu0 0.0
      %765 = vmatprep.subr.mxu0 0.0
      %766 = vmatpush1.msra.mxu0 0.0
      %767 = vmatprep.subr.mxu0 0.0
      %768 = vmatpush1.msra.mxu0 0.0
      %769 = vmatprep.subr.mxu0 0.0
      %770 = vmatpush1.msra.mxu0 0.0
      %771 = vmatprep.subr.mxu0 0.0
      %772 = vmatpush1.msra.mxu0 0.0
      %773 = vmatprep.subr.mxu0 0.0
      %774 = vmatpush1.msra.mxu0 %v741
      %775 = vmatprep.subr.mxu0 0.0
      %776 = vmatpush2.msra.mxu0 0.0
      %777 = vmatprep.subr.mxu0 0.0
      %778 = vmatpush2.msra.mxu0 0.0
      %779 = vmatprep.subr.mxu0 0.0
      %780 = vmatpush2.msra.mxu0 0.0
      %781 = vmatprep.subr.mxu0 0.0
      %782 = vmatpush2.msra.mxu0 0.0
      %783 = vmatprep.subr.mxu0 0.0
      %784 = vmatpush2.msra.mxu0 0.0
      %785 = vmatprep.subr.mxu0 0.0
      %786 = vmatpush2.msra.mxu0 0.0
      %787 = vmatprep.subr.mxu0 0.0
      %788 = vmatpush2.msra.mxu0 0.0
      %789 = vmatprep.subr.mxu0 0.0
      %790 = vmatpush2.msra.mxu0 0.0
      %791 = vmatprep.subr.mxu0 0.0
      %792 = vmatpush2.msra.mxu0 0.0
      %793 = vmatprep.subr.mxu0 0.0
      %794 = vmatpush2.msra.mxu0 0.0
      %795 = vmatprep.subr.mxu0 0.0
      %796 = vmatpush2.msra.mxu0 0.0
      %797 = vmatprep.subr.mxu0 0.0
      %798 = vmatpush2.msra.mxu0 0.0
      %799 = vmatprep.subr.mxu0 0.0
      %800 = vmatpush2.msra.mxu0 0.0
      %801 = vmatprep.subr.mxu0 0.0
      %802 = vmatpush2.msra.mxu0 0.0
      %803 = vmatprep.subr.mxu0 0.0
      %804 = vmatpush2.msra.mxu0 0.0
      %805 = vmatprep.subr.mxu0 0.0
      %806 = vmatpush2.msra.mxu0 0.0
      %807 = vmatprep.mubr.f32.mxu0 0.0
      %808 = vmatmul.mubr.f32.gmra.mxu0 %v738
      %v809 = vpop.f32.mrf.mxu0
      %v810 = vadd.f32 0.0, %v809
      %v811 = vpop.f32.mrf.mxu0
      %812 = vdwg.mxu0
      %v813 = vadd.f32 %v735, %v810
      %814 = vset.pattern.permute.xlu0 88
      %815 = vperm.xlu0 %814, %v149
      %v816 = vpop.permute.xlu0 %815
      %v818 = vadd.f32 %v813, %v816
      %vm819 = vcmp.gt.f32.partialorder %v818, 0.0
      %v820 = vmul.f32 %v818, 0.01
      %v821 = vsel %vm819, %v818, %v820
      %822 = vset.pattern.permute.xlu0 104
      %823 = vperm.xlu0 %822, %v149
      %v824 = vpop.permute.xlu0 %823
      %826 = vrot.lane.b32.xlu0 %v149, 32
      %v827 = vpop.permute.xlu0 %826
      %v828 = vsel %vm223, %v827, 0
      %v831 = vsel %vm226, %v821, 0
      %833 = vmatprep.subr.mxu0 0.0
      %834 = vmatpush1.msra.mxu0 0.0
      %835 = vmatprep.subr.mxu0 0.0
      %836 = vmatpush1.msra.mxu0 0.0
      %837 = vmatprep.subr.mxu0 0.0
      %838 = vmatpush1.msra.mxu0 0.0
      %839 = vmatprep.subr.mxu0 0.0
      %840 = vmatpush1.msra.mxu0 0.0
      %841 = vmatprep.subr.mxu0 0.0
      %842 = vmatpush1.msra.mxu0 0.0
      %843 = vmatprep.subr.mxu0 0.0
      %844 = vmatpush1.msra.mxu0 0.0
      %845 = vmatprep.subr.mxu0 0.0
      %846 = vmatpush1.msra.mxu0 0.0
      %847 = vmatprep.subr.mxu0 0.0
      %848 = vmatpush1.msra.mxu0 0.0
      %849 = vmatprep.subr.mxu0 0.0
      %850 = vmatpush1.msra.mxu0 0.0
      %851 = vmatprep.subr.mxu0 0.0
      %852 = vmatpush1.msra.mxu0 0.0
      %853 = vmatprep.subr.mxu0 0.0
      %854 = vmatpush1.msra.mxu0 0.0
      %855 = vmatprep.subr.mxu0 0.0
      %856 = vmatpush1.msra.mxu0 0.0
      %857 = vmatprep.subr.mxu0 0.0
      %858 = vmatpush1.msra.mxu0 0.0
      %859 = vmatprep.subr.mxu0 0.0
      %860 = vmatpush1.msra.mxu0 0.0
      %861 = vmatprep.subr.mxu0 0.0
      %862 = vmatpush1.msra.mxu0 0.0
      %863 = vmatprep.subr.mxu0 0.0
      %864 = vmatpush1.msra.mxu0 %v831
      %865 = vmatprep.subr.mxu0 0.0
      %866 = vmatpush2.msra.mxu0 0.0
      %867 = vmatprep.subr.mxu0 0.0
      %868 = vmatpush2.msra.mxu0 0.0
      %869 = vmatprep.subr.mxu0 0.0
      %870 = vmatpush2.msra.mxu0 0.0
      %871 = vmatprep.subr.mxu0 0.0
      %872 = vmatpush2.msra.mxu0 0.0
      %873 = vmatprep.subr.mxu0 0.0
      %874 = vmatpush2.msra.mxu0 0.0
      %875 = vmatprep.subr.mxu0 0.0
      %876 = vmatpush2.msra.mxu0 0.0
      %877 = vmatprep.subr.mxu0 0.0
      %878 = vmatpush2.msra.mxu0 0.0
      %879 = vmatprep.subr.mxu0 0.0
      %880 = vmatpush2.msra.mxu0 0.0
      %881 = vmatprep.subr.mxu0 0.0
      %882 = vmatpush2.msra.mxu0 0.0
      %883 = vmatprep.subr.mxu0 0.0
      %884 = vmatpush2.msra.mxu0 0.0
      %885 = vmatprep.subr.mxu0 0.0
      %886 = vmatpush2.msra.mxu0 0.0
      %887 = vmatprep.subr.mxu0 0.0
      %888 = vmatpush2.msra.mxu0 0.0
      %889 = vmatprep.subr.mxu0 0.0
      %890 = vmatpush2.msra.mxu0 0.0
      %891 = vmatprep.subr.mxu0 0.0
      %892 = vmatpush2.msra.mxu0 0.0
      %893 = vmatprep.subr.mxu0 0.0
      %894 = vmatpush2.msra.mxu0 0.0
      %895 = vmatprep.subr.mxu0 0.0
      %896 = vmatpush2.msra.mxu0 0.0
      %897 = vmatprep.mubr.f32.mxu0 0.0
      %898 = vmatmul.mubr.f32.gmra.mxu0 %v828
      %v899 = vpop.f32.mrf.mxu0
      %v900 = vadd.f32 %v824, %v899
      %v901 = vpop.f32.mrf.mxu0
      %902 = vdwg.mxu0
      %vm903 = vcmp.gt.f32.partialorder %v900, 0.0
      %v904 = vmul.f32 %v900, 0.01
      %v905 = vsel %vm903, %v900, %v904
      %906 = vrot.lane.b32.xlu0 %v905, 1
      %v907 = vpop.permute.xlu0 %906
      %v908 = vsel %vm145, %v907, 0.0
      %909 = vrot.lane.b32.xlu0 %v905, 127
      %v910 = vpop.permute.xlu0 %909
      %v911 = vsel %vm455, %v910, 0.0
      %912 = vrot.lane.b32.xlu0 %v149, 8
      %v913 = vpop.permute.xlu0 %912
      %v914 = vsel %vm223, %v913, 0
      %v917 = vsel %vm226, %v905, 0
      %919 = vmatprep.subr.mxu0 0.0
      %920 = vmatpush1.msra.mxu0 0.0
      %921 = vmatprep.subr.mxu0 0.0
      %922 = vmatpush1.msra.mxu0 0.0
      %923 = vmatprep.subr.mxu0 0.0
      %924 = vmatpush1.msra.mxu0 0.0
      %925 = vmatprep.subr.mxu0 0.0
      %926 = vmatpush1.msra.mxu0 0.0
      %927 = vmatprep.subr.mxu0 0.0
      %928 = vmatpush1.msra.mxu0 0.0
      %929 = vmatprep.subr.mxu0 0.0
      %930 = vmatpush1.msra.mxu0 0.0
      %931 = vmatprep.subr.mxu0 0.0
      %932 = vmatpush1.msra.mxu0 0.0
      %933 = vmatprep.subr.mxu0 0.0
      %934 = vmatpush1.msra.mxu0 0.0
      %935 = vmatprep.subr.mxu0 0.0
      %936 = vmatpush1.msra.mxu0 0.0
      %937 = vmatprep.subr.mxu0 0.0
      %938 = vmatpush1.msra.mxu0 0.0
      %939 = vmatprep.subr.mxu0 0.0
      %940 = vmatpush1.msra.mxu0 0.0
      %941 = vmatprep.subr.mxu0 0.0
      %942 = vmatpush1.msra.mxu0 0.0
      %943 = vmatprep.subr.mxu0 0.0
      %944 = vmatpush1.msra.mxu0 0.0
      %945 = vmatprep.subr.mxu0 0.0
      %946 = vmatpush1.msra.mxu0 0.0
      %947 = vmatprep.subr.mxu0 0.0
      %948 = vmatpush1.msra.mxu0 0.0
      %949 = vmatprep.subr.mxu0 0.0
      %950 = vmatpush1.msra.mxu0 %v917
      %951 = vmatprep.subr.mxu0 0.0
      %952 = vmatpush2.msra.mxu0 0.0
      %953 = vmatprep.subr.mxu0 0.0
      %954 = vmatpush2.msra.mxu0 0.0
      %955 = vmatprep.subr.mxu0 0.0
      %956 = vmatpush2.msra.mxu0 0.0
      %957 = vmatprep.subr.mxu0 0.0
      %958 = vmatpush2.msra.mxu0 0.0
      %959 = vmatprep.subr.mxu0 0.0
      %960 = vmatpush2.msra.mxu0 0.0
      %961 = vmatprep.subr.mxu0 0.0
      %962 = vmatpush2.msra.mxu0 0.0
      %963 = vmatprep.subr.mxu0 0.0
      %964 = vmatpush2.msra.mxu0 0.0
      %965 = vmatprep.subr.mxu0 0.0
      %966 = vmatpush2.msra.mxu0 0.0
      %967 = vmatprep.subr.mxu0 0.0
      %968 = vmatpush2.msra.mxu0 0.0
      %969 = vmatprep.subr.mxu0 0.0
      %970 = vmatpush2.msra.mxu0 0.0
      %971 = vmatprep.subr.mxu0 0.0
      %972 = vmatpush2.msra.mxu0 0.0
      %973 = vmatprep.subr.mxu0 0.0
      %974 = vmatpush2.msra.mxu0 0.0
      %975 = vmatprep.subr.mxu0 0.0
      %976 = vmatpush2.msra.mxu0 0.0
      %977 = vmatprep.subr.mxu0 0.0
      %978 = vmatpush2.msra.mxu0 0.0
      %979 = vmatprep.subr.mxu0 0.0
      %980 = vmatpush2.msra.mxu0 0.0
      %981 = vmatprep.subr.mxu0 0.0
      %982 = vmatpush2.msra.mxu0 0.0
      %983 = vmatprep.mubr.f32.mxu0 0.0
      %984 = vmatmul.mubr.f32.gmra.mxu0 %v914
      %v985 = vpop.f32.mrf.mxu0
      %v986 = vadd.f32 0.0, %v985
      %v987 = vpop.f32.mrf.mxu0
      %988 = vdwg.mxu0
      %989 = vrot.lane.b32.xlu0 %v149, 16
      %v990 = vpop.permute.xlu0 %989
      %v991 = vsel %vm223, %v990, 0
      %v994 = vsel %vm226, %v908, 0
      %996 = vmatprep.subr.mxu0 0.0
      %997 = vmatpush1.msra.mxu0 0.0
      %998 = vmatprep.subr.mxu0 0.0
      %999 = vmatpush1.msra.mxu0 0.0
      %1000 = vmatprep.subr.mxu0 0.0
      %1001 = vmatpush1.msra.mxu0 0.0
      %1002 = vmatprep.subr.mxu0 0.0
      %1003 = vmatpush1.msra.mxu0 0.0
      %1004 = vmatprep.subr.mxu0 0.0
      %1005 = vmatpush1.msra.mxu0 0.0
      %1006 = vmatprep.subr.mxu0 0.0
      %1007 = vmatpush1.msra.mxu0 0.0
      %1008 = vmatprep.subr.mxu0 0.0
      %1009 = vmatpush1.msra.mxu0 0.0
      %1010 = vmatprep.subr.mxu0 0.0
      %1011 = vmatpush1.msra.mxu0 0.0
      %1012 = vmatprep.subr.mxu0 0.0
      %1013 = vmatpush1.msra.mxu0 0.0
      %1014 = vmatprep.subr.mxu0 0.0
      %1015 = vmatpush1.msra.mxu0 0.0
      %1016 = vmatprep.subr.mxu0 0.0
      %1017 = vmatpush1.msra.mxu0 0.0
      %1018 = vmatprep.subr.mxu0 0.0
      %1019 = vmatpush1.msra.mxu0 0.0
      %1020 = vmatprep.subr.mxu0 0.0
      %1021 = vmatpush1.msra.mxu0 0.0
      %1022 = vmatprep.subr.mxu0 0.0
      %1023 = vmatpush1.msra.mxu0 0.0
      %1024 = vmatprep.subr.mxu0 0.0
      %1025 = vmatpush1.msra.mxu0 0.0
      %1026 = vmatprep.subr.mxu0 0.0
      %1027 = vmatpush1.msra.mxu0 %v994
      %1028 = vmatprep.subr.mxu0 0.0
      %1029 = vmatpush2.msra.mxu0 0.0
      %1030 = vmatprep.subr.mxu0 0.0
      %1031 = vmatpush2.msra.mxu0 0.0
      %1032 = vmatprep.subr.mxu0 0.0
      %1033 = vmatpush2.msra.mxu0 0.0
      %1034 = vmatprep.subr.mxu0 0.0
      %1035 = vmatpush2.msra.mxu0 0.0
      %1036 = vmatprep.subr.mxu0 0.0
      %1037 = vmatpush2.msra.mxu0 0.0
      %1038 = vmatprep.subr.mxu0 0.0
      %1039 = vmatpush2.msra.mxu0 0.0
      %1040 = vmatprep.subr.mxu0 0.0
      %1041 = vmatpush2.msra.mxu0 0.0
      %1042 = vmatprep.subr.mxu0 0.0
      %1043 = vmatpush2.msra.mxu0 0.0
      %1044 = vmatprep.subr.mxu0 0.0
      %1045 = vmatpush2.msra.mxu0 0.0
      %1046 = vmatprep.subr.mxu0 0.0
      %1047 = vmatpush2.msra.mxu0 0.0
      %1048 = vmatprep.subr.mxu0 0.0
      %1049 = vmatpush2.msra.mxu0 0.0
      %1050 = vmatprep.subr.mxu0 0.0
      %1051 = vmatpush2.msra.mxu0 0.0
      %1052 = vmatprep.subr.mxu0 0.0
      %1053 = vmatpush2.msra.mxu0 0.0
      %1054 = vmatprep.subr.mxu0 0.0
      %1055 = vmatpush2.msra.mxu0 0.0
      %1056 = vmatprep.subr.mxu0 0.0
      %1057 = vmatpush2.msra.mxu0 0.0
      %1058 = vmatprep.subr.mxu0 0.0
      %1059 = vmatpush2.msra.mxu0 0.0
      %1060 = vmatprep.mubr.f32.mxu0 0.0
      %1061 = vmatmul.mubr.f32.gmra.mxu0 %v991
      %v1062 = vpop.f32.mrf.mxu0
      %v1063 = vadd.f32 %v986, %v1062
      %v1064 = vpop.f32.mrf.mxu0
      %1065 = vdwg.mxu0
      %v1066 = vld [vmem:[%s1 + $0x8] sm:$0xf]
      %v1068 = vsel %vm223, %v1066, 0
      %v1071 = vsel %vm226, %v911, 0
      %1073 = vmatprep.subr.mxu0 0.0
      %1074 = vmatpush1.msra.mxu0 0.0
      %1075 = vmatprep.subr.mxu0 0.0
      %1076 = vmatpush1.msra.mxu0 0.0
      %1077 = vmatprep.subr.mxu0 0.0
      %1078 = vmatpush1.msra.mxu0 0.0
      %1079 = vmatprep.subr.mxu0 0.0
      %1080 = vmatpush1.msra.mxu0 0.0
      %1081 = vmatprep.subr.mxu0 0.0
      %1082 = vmatpush1.msra.mxu0 0.0
      %1083 = vmatprep.subr.mxu0 0.0
      %1084 = vmatpush1.msra.mxu0 0.0
      %1085 = vmatprep.subr.mxu0 0.0
      %1086 = vmatpush1.msra.mxu0 0.0
      %1087 = vmatprep.subr.mxu0 0.0
      %1088 = vmatpush1.msra.mxu0 0.0
      %1089 = vmatprep.subr.mxu0 0.0
      %1090 = vmatpush1.msra.mxu0 0.0
      %1091 = vmatprep.subr.mxu0 0.0
      %1092 = vmatpush1.msra.mxu0 0.0
      %1093 = vmatprep.subr.mxu0 0.0
      %1094 = vmatpush1.msra.mxu0 0.0
      %1095 = vmatprep.subr.mxu0 0.0
      %1096 = vmatpush1.msra.mxu0 0.0
      %1097 = vmatprep.subr.mxu0 0.0
      %1098 = vmatpush1.msra.mxu0 0.0
      %1099 = vmatprep.subr.mxu0 0.0
      %1100 = vmatpush1.msra.mxu0 0.0
      %1101 = vmatprep.subr.mxu0 0.0
      %1102 = vmatpush1.msra.mxu0 0.0
      %1103 = vmatprep.subr.mxu0 0.0
      %1104 = vmatpush1.msra.mxu0 %v1071
      %1105 = vmatprep.subr.mxu0 0.0
      %1106 = vmatpush2.msra.mxu0 0.0
      %1107 = vmatprep.subr.mxu0 0.0
      %1108 = vmatpush2.msra.mxu0 0.0
      %1109 = vmatprep.subr.mxu0 0.0
      %1110 = vmatpush2.msra.mxu0 0.0
      %1111 = vmatprep.subr.mxu0 0.0
      %1112 = vmatpush2.msra.mxu0 0.0
      %1113 = vmatprep.subr.mxu0 0.0
      %1114 = vmatpush2.msra.mxu0 0.0
      %1115 = vmatprep.subr.mxu0 0.0
      %1116 = vmatpush2.msra.mxu0 0.0
      %1117 = vmatprep.subr.mxu0 0.0
      %1118 = vmatpush2.msra.mxu0 0.0
      %1119 = vmatprep.subr.mxu0 0.0
      %1120 = vmatpush2.msra.mxu0 0.0
      %1121 = vmatprep.subr.mxu0 0.0
      %1122 = vmatpush2.msra.mxu0 0.0
      %1123 = vmatprep.subr.mxu0 0.0
      %1124 = vmatpush2.msra.mxu0 0.0
      %1125 = vmatprep.subr.mxu0 0.0
      %1126 = vmatpush2.msra.mxu0 0.0
      %1127 = vmatprep.subr.mxu0 0.0
      %1128 = vmatpush2.msra.mxu0 0.0
      %1129 = vmatprep.subr.mxu0 0.0
      %1130 = vmatpush2.msra.mxu0 0.0
      %1131 = vmatprep.subr.mxu0 0.0
      %1132 = vmatpush2.msra.mxu0 0.0
      %1133 = vmatprep.subr.mxu0 0.0
      %1134 = vmatpush2.msra.mxu0 0.0
      %1135 = vmatprep.subr.mxu0 0.0
      %1136 = vmatpush2.msra.mxu0 0.0
      %1137 = vmatprep.mubr.f32.mxu0 0.0
      %1138 = vmatmul.mubr.f32.gmra.mxu0 %v1068
      %v1139 = vpop.f32.mrf.mxu0
      %v1140 = vadd.f32 0.0, %v1139
      %v1141 = vpop.f32.mrf.mxu0
      %1142 = vdwg.mxu0
      %v1143 = vadd.f32 %v1063, %v1140
      %1144 = vset.pattern.permute.xlu0 8
      %1145 = vperm.xlu0 %1144, %v1066
      %v1146 = vpop.permute.xlu0 %1145
      %v1148 = vadd.f32 %v1143, %v1146
      %vm1149 = vcmp.gt.f32.partialorder %v1148, 0.0
      %v1150 = vmul.f32 %v1148, 0.01
      %v1151 = vsel %vm1149, %v1148, %v1150
      %v1152 = vld [vmem:[%s1 + $0x8] sm:$0x1]
      %1154 = vrot.lane.b32.xlu0 %v1152, 104
      %v1155 = vpop.permute.xlu0 %1154
      %v1156 = vsel %vm223, %v1155, 0
      %v1159 = vsel %vm226, %v450, 0
      %1161 = vmatprep.subr.mxu0 0.0
      %1162 = vmatpush1.msra.mxu0 0.0
      %1163 = vmatprep.subr.mxu0 0.0
      %1164 = vmatpush1.msra.mxu0 0.0
      %1165 = vmatprep.subr.mxu0 0.0
      %1166 = vmatpush1.msra.mxu0 0.0
      %1167 = vmatprep.subr.mxu0 0.0
      %1168 = vmatpush1.msra.mxu0 0.0
      %1169 = vmatprep.subr.mxu0 0.0
      %1170 = vmatpush1.msra.mxu0 0.0
      %1171 = vmatprep.subr.mxu0 0.0
      %1172 = vmatpush1.msra.mxu0 0.0
      %1173 = vmatprep.subr.mxu0 0.0
      %1174 = vmatpush1.msra.mxu0 0.0
      %1175 = vmatprep.subr.mxu0 0.0
      %1176 = vmatpush1.msra.mxu0 0.0
      %1177 = vmatprep.subr.mxu0 0.0
      %1178 = vmatpush1.msra.mxu0 0.0
      %1179 = vmatprep.subr.mxu0 0.0
      %1180 = vmatpush1.msra.mxu0 0.0
      %1181 = vmatprep.subr.mxu0 0.0
      %1182 = vmatpush1.msra.mxu0 0.0
      %1183 = vmatprep.subr.mxu0 0.0
      %1184 = vmatpush1.msra.mxu0 0.0
      %1185 = vmatprep.subr.mxu0 0.0
      %1186 = vmatpush1.msra.mxu0 0.0
      %1187 = vmatprep.subr.mxu0 0.0
      %1188 = vmatpush1.msra.mxu0 0.0
      %1189 = vmatprep.subr.mxu0 0.0
      %1190 = vmatpush1.msra.mxu0 0.0
      %1191 = vmatprep.subr.mxu0 0.0
      %1192 = vmatpush1.msra.mxu0 %v1159
      %1193 = vmatprep.subr.mxu0 0.0
      %1194 = vmatpush2.msra.mxu0 0.0
      %1195 = vmatprep.subr.mxu0 0.0
      %1196 = vmatpush2.msra.mxu0 0.0
      %1197 = vmatprep.subr.mxu0 0.0
      %1198 = vmatpush2.msra.mxu0 0.0
      %1199 = vmatprep.subr.mxu0 0.0
      %1200 = vmatpush2.msra.mxu0 0.0
      %1201 = vmatprep.subr.mxu0 0.0
      %1202 = vmatpush2.msra.mxu0 0.0
      %1203 = vmatprep.subr.mxu0 0.0
      %1204 = vmatpush2.msra.mxu0 0.0
      %1205 = vmatprep.subr.mxu0 0.0
      %1206 = vmatpush2.msra.mxu0 0.0
      %1207 = vmatprep.subr.mxu0 0.0
      %1208 = vmatpush2.msra.mxu0 0.0
      %1209 = vmatprep.subr.mxu0 0.0
      %1210 = vmatpush2.msra.mxu0 0.0
      %1211 = vmatprep.subr.mxu0 0.0
      %1212 = vmatpush2.msra.mxu0 0.0
      %1213 = vmatprep.subr.mxu0 0.0
      %1214 = vmatpush2.msra.mxu0 0.0
      %1215 = vmatprep.subr.mxu0 0.0
      %1216 = vmatpush2.msra.mxu0 0.0
      %1217 = vmatprep.subr.mxu0 0.0
      %1218 = vmatpush2.msra.mxu0 0.0
      %1219 = vmatprep.subr.mxu0 0.0
      %1220 = vmatpush2.msra.mxu0 0.0
      %1221 = vmatprep.subr.mxu0 0.0
      %1222 = vmatpush2.msra.mxu0 0.0
      %1223 = vmatprep.subr.mxu0 0.0
      %1224 = vmatpush2.msra.mxu0 0.0
      %1225 = vmatprep.mubr.f32.mxu0 0.0
      %1226 = vmatmul.mubr.f32.gmra.mxu0 %v1156
      %v1227 = vpop.f32.mrf.mxu0
      %v1228 = vadd.f32 0.0, %v1227
      %v1229 = vpop.f32.mrf.mxu0
      %1230 = vdwg.mxu0
      %1231 = vrot.lane.b32.xlu0 %v1152, 112
      %v1232 = vpop.permute.xlu0 %1231
      %v1233 = vsel %vm223, %v1232, 0
      %v1236 = vsel %vm226, %v1151, 0
      %1238 = vmatprep.subr.mxu0 0.0
      %1239 = vmatpush1.msra.mxu0 0.0
      %1240 = vmatprep.subr.mxu0 0.0
      %1241 = vmatpush1.msra.mxu0 0.0
      %1242 = vmatprep.subr.mxu0 0.0
      %1243 = vmatpush1.msra.mxu0 0.0
      %1244 = vmatprep.subr.mxu0 0.0
      %1245 = vmatpush1.msra.mxu0 0.0
      %1246 = vmatprep.subr.mxu0 0.0
      %1247 = vmatpush1.msra.mxu0 0.0
      %1248 = vmatprep.subr.mxu0 0.0
      %1249 = vmatpush1.msra.mxu0 0.0
      %1250 = vmatprep.subr.mxu0 0.0
      %1251 = vmatpush1.msra.mxu0 0.0
      %1252 = vmatprep.subr.mxu0 0.0
      %1253 = vmatpush1.msra.mxu0 0.0
      %1254 = vmatprep.subr.mxu0 0.0
      %1255 = vmatpush1.msra.mxu0 0.0
      %1256 = vmatprep.subr.mxu0 0.0
      %1257 = vmatpush1.msra.mxu0 0.0
      %1258 = vmatprep.subr.mxu0 0.0
      %1259 = vmatpush1.msra.mxu0 0.0
      %1260 = vmatprep.subr.mxu0 0.0
      %1261 = vmatpush1.msra.mxu0 0.0
      %1262 = vmatprep.subr.mxu0 0.0
      %1263 = vmatpush1.msra.mxu0 0.0
      %1264 = vmatprep.subr.mxu0 0.0
      %1265 = vmatpush1.msra.mxu0 0.0
      %1266 = vmatprep.subr.mxu0 0.0
      %1267 = vmatpush1.msra.mxu0 0.0
      %1268 = vmatprep.subr.mxu0 0.0
      %1269 = vmatpush1.msra.mxu0 %v1236
      %1270 = vmatprep.subr.mxu0 0.0
      %1271 = vmatpush2.msra.mxu0 0.0
      %1272 = vmatprep.subr.mxu0 0.0
      %1273 = vmatpush2.msra.mxu0 0.0
      %1274 = vmatprep.subr.mxu0 0.0
      %1275 = vmatpush2.msra.mxu0 0.0
      %1276 = vmatprep.subr.mxu0 0.0
      %1277 = vmatpush2.msra.mxu0 0.0
      %1278 = vmatprep.subr.mxu0 0.0
      %1279 = vmatpush2.msra.mxu0 0.0
      %1280 = vmatprep.subr.mxu0 0.0
      %1281 = vmatpush2.msra.mxu0 0.0
      %1282 = vmatprep.subr.mxu0 0.0
      %1283 = vmatpush2.msra.mxu0 0.0
      %1284 = vmatprep.subr.mxu0 0.0
      %1285 = vmatpush2.msra.mxu0 0.0
      %1286 = vmatprep.subr.mxu0 0.0
      %1287 = vmatpush2.msra.mxu0 0.0
      %1288 = vmatprep.subr.mxu0 0.0
      %1289 = vmatpush2.msra.mxu0 0.0
      %1290 = vmatprep.subr.mxu0 0.0
      %1291 = vmatpush2.msra.mxu0 0.0
      %1292 = vmatprep.subr.mxu0 0.0
      %1293 = vmatpush2.msra.mxu0 0.0
      %1294 = vmatprep.subr.mxu0 0.0
      %1295 = vmatpush2.msra.mxu0 0.0
      %1296 = vmatprep.subr.mxu0 0.0
      %1297 = vmatpush2.msra.mxu0 0.0
      %1298 = vmatprep.subr.mxu0 0.0
      %1299 = vmatpush2.msra.mxu0 0.0
      %1300 = vmatprep.subr.mxu0 0.0
      %1301 = vmatpush2.msra.mxu0 0.0
      %1302 = vmatprep.mubr.f32.mxu0 0.0
      %1303 = vmatmul.mubr.f32.gmra.mxu0 %v1233
      %v1304 = vpop.f32.mrf.mxu0
      %v1305 = vadd.f32 %v1228, %v1304
      %v1306 = vpop.f32.mrf.mxu0
      %1307 = vdwg.mxu0
      %1308 = vset.pattern.permute.xlu0 32
      %1309 = vperm.xlu0 %1308, %v1152
      %v1310 = vpop.permute.xlu0 %1309
      %v1312 = vadd.f32 %v1305, %v1310
      %vm1313 = vcmp.gt.f32.partialorder %v1312, 0.0
      %v1314 = vmul.f32 %v1312, 0.01
      %v1315 = vsel %vm1313, %v1312, %v1314
      %v1316 = vld [vmem:[%s1 + $0x10] sm:$0xf]
      %v1317 = vlaneseq
      %v1318 = vshrl.u32 %v1317, 7
      %v1319 = vsub.s32 0, %v1318
      %v1320 = vrot.slane %v1315, %v1319
      %v1321 = vmul.f32 %v1316, %v1320
      %v1322 = vand.u32 %v141, 1
      %vm1323 = vcmp.eq.s32.totalorder %v1322, 0
      %1324 = vrot.lane.b32.xlu0 %v1321, 127
      %v1325 = vpop.permute.xlu0 %1324
      %1326 = vrot.lane.b32.xlu0 %v1321, 1
      %v1327 = vpop.permute.xlu0 %1326
      %v1328 = vsel %vm1323, %v1325, %v1327
      %v1329 = vadd.f32 %v1321, %v1328
      %v1330 = vand.u32 %v141, 2
      %vm1331 = vcmp.eq.s32.totalorder %v1330, 0
      %1332 = vrot.lane.b32.xlu0 %v1329, 126
      %v1333 = vpop.permute.xlu0 %1332
      %1334 = vrot.lane.b32.xlu0 %v1329, 2
      %v1335 = vpop.permute.xlu0 %1334
      %v1336 = vsel %vm1331, %v1333, %v1335
      %v1337 = vadd.f32 %v1329, %v1336
      %1338 = vrot.lane.b32.xlu0 %v1337, 124
      %v1339 = vpop.permute.xlu0 %1338
      %1340 = vrot.lane.b32.xlu0 %v1337, 4
      %v1341 = vpop.permute.xlu0 %1340
      %v1342 = vsel %vm198, %v1339, %v1341
      %v1343 = vadd.f32 %v1337, %v1342
      %1344 = vrot.lane.b32.xlu0 %v1343, 120
      %v1345 = vpop.permute.xlu0 %1344
      %1346 = vrot.lane.b32.xlu0 %v1343, 8
      %v1347 = vpop.permute.xlu0 %1346
      %v1348 = vsel %vm206, %v1345, %v1347
      %v1349 = vadd.f32 %v1343, %v1348
      %1350 = vset.pattern.permute.xlu0 40
      %1351 = vperm.xlu0 %1350, %v1066
      %v1352 = vpop.permute.xlu0 %1351
      %v1354 = vadd.f32 %v1349, %v1352
      %1355 = vst [vmem:[%s138] sm:$0xf] %v1354
      %p1356 = scmp.lt.s32.totalorder %s13, 1
      %s1357 = scalar_select %p1356, %s13, 1
      %s1358 = smul.addr %s1357, 4
      %s1359 = scalar_lea.vmem %s2, %s1358
      // Predicated region
      $region29: #{_lambda_.1} parent=27 // pred_check
        %p1360 = pneg %p78
      $region30: #{_lambda_.1} parent=27 // pred_check_branch
        %1362 = sbr.rel (%p1360) target = $region32
      $region31: #{_lambda_.1} parent=27 // pred_region
        _
      $region32: #{_lambda_.1} parent=27 // pred_fallthru
        _
    $region28: #{_lambda_.1} parent=5 // pred_fallthru
      _
    %p1363 = scmp.le.s32.totalorder 2, %s8
    // Predicated region
    $region33: #{_lambda_.1} parent=5 // pred_check
      %p1364 = pneg %p1363
    $region34: #{_lambda_.1} parent=5 // pred_check_branch
      %1366 = sbr.rel (%p1364) target = $region36
    $region35: #{_lambda_.1} parent=5 // pred_region
      %s1367 = ssub.s32 %s8, 2
      // Predicated region
      $region37: #{_lambda_.1} parent=35 // pred_check
        %p1368 = pneg %p84
      $region38: #{_lambda_.1} parent=35 // pred_check_branch
        %1370 = sbr.rel (%p1368) target = $region40
      $region39: #{_lambda_.1} parent=35 // pred_region
        %p1371 = scmp.lt.s32.totalorder %s14, 1
        %s1372 = scalar_select %p1371, %s14, 1
        %s1373 = smul.addr %s1372, 4
        %s1374 = scalar_lea.vmem %s2, %s1373
      $region40: #{_lambda_.1} parent=35 // pred_fallthru
        _
    $region36: #{_lambda_.1} parent=5 // pred_fallthru
      _
  $region6: #{_lambda_.1} parent=0 // loop_footer
    %s12 = sadd.s32 1, %s8
  $region7: #{_lambda_.1} parent=0 // loop_footer_branch
    %7 = sbr.rel target = $region3
  $region8: #{_lambda_.1} parent=0 // loop_exit
    _

</llo_original>
